<compile_context>
chip_gen: v6e
topology: v6e:2x2x1
jax: 0.10.0
libtpu: 0.0.40
codegen_flags: <defaults>
</compile_context>

<pallas_src>
import jax
import jax.numpy as jnp
from jax.experimental import pallas as pl
from jax.experimental.pallas import tpu as pltpu


# -------------------- deterministic "config" (loss alphas) --------------------
class DelightfulConfig:
    mel_loss_alpha = 1.0
    aligner_loss_alpha = 1.0
    pitch_loss_alpha = 1.0
    energy_loss_alpha = 1.0
    u_prosody_loss_alpha = 0.5
    p_prosody_loss_alpha = 0.5
    dur_loss_alpha = 1.0
    char_dur_loss_alpha = 0.01
    binary_align_loss_alpha = 0.1
    vocoder_mel_loss_alpha = 10.0
    feat_loss_alpha = 1.0
    gen_loss_alpha = 1.0
    multi_scale_stft_loss_alpha = 2.5
    multi_scale_stft_loss_params = {}  # unused (MultiScaleSTFTLoss not implemented)


# -------------------- fused core-loss kernel --------------------
_ACC_LANES = 128
(_MEL_ABS, _PP_ABS, _UP_ABS, _DUR_SQ, _PITCH_SQ,
 _ENERGY_SQ, _BIN_LOG, _HARD_SUM, _SPEC_ABS) = range(9)


def _core_loss_kernel(mel_lens_ref, src_lens_ref,
                      mel_out_ref, mel_tgt_ref,
                      spec_ref, spec_hat_ref,
                      hard_ref, soft_ref,
                      dur_out_ref, dur_tgt_ref,
                      pitch_out_ref, pitch_tgt_ref,
                      energy_out_ref, energy_tgt_ref,
                      pp_ref_ref, pp_pred_ref,
                      up_ref_ref, up_pred_ref,
                      acc_ref):
    b = pl.program_id(0)       # batch row  ("parallel" -> megacore shards it)
    t = pl.program_id(1)       # T_mel tile ("arbitrary" -> accumulation axis)
    tt = mel_out_ref.shape[2]

    lane = jax.lax.broadcasted_iota(jnp.int32, (1, 1, _ACC_LANES), 2)

    def scatter(idx, val):
        # place a scalar partial sum into one lane of the (1,1,128) accumulator
        return jnp.where(lane == idx, val, 0.0)

    @pl.when(t == 0)
    def _init():
        acc_ref[...] = jnp.zeros_like(acc_ref)

    # ---------- terms tiled over T_mel (run every grid step) ----------
    mel_len_b = mel_lens_ref[b]
    col = jax.lax.broadcasted_iota(jnp.int32, (1, 1, tt), 2) + t * tt
    mel_m = (col < mel_len_b).astype(jnp.float32)                      # (1,1,tt)

    mel_abs = jnp.sum(
        jnp.abs(mel_out_ref[...].astype(jnp.float32)
                - mel_tgt_ref[...].astype(jnp.float32)) * mel_m)

    hard = hard_ref[...].astype(jnp.float32)
    log_soft = jnp.log(jnp.maximum(soft_ref[...].astype(jnp.float32), 1e-12))
    bin_log = jnp.sum(hard * log_soft)
    hard_sum = jnp.sum(hard)

    acc_ref[...] += (scatter(_MEL_ABS, mel_abs)
                     + scatter(_BIN_LOG, bin_log)
                     + scatter(_HARD_SUM, hard_sum))

    # ---------- per-utterance (T_src / spec) terms: once per batch row ----------
    @pl.when(t == 0)
    def _small():
        src_len_b = src_lens_ref[b]
        t_src = pitch_out_ref.shape[2]
        scol = jax.lax.broadcasted_iota(jnp.int32, (1, 1, t_src), 2)
        src_m = (scol < src_len_b).astype(jnp.float32)                 # (1,1,T_src)

        spec_abs = jnp.sum(jnp.abs(spec_ref[...].astype(jnp.float32)
                                   - spec_hat_ref[...].astype(jnp.float32)))
        pp_abs = jnp.sum(jnp.abs(pp_ref_ref[...] - pp_pred_ref[...]) * src_m)
        up_abs = jnp.sum(jnp.abs(up_ref_ref[...] - up_pred_ref[...]))
        dd = dur_out_ref[...] - dur_tgt_ref[...]
        dur_sq = jnp.sum(dd * dd)
        dp = (pitch_out_ref[...] - pitch_tgt_ref[...]) * src_m
        pitch_sq = jnp.sum(dp * dp)
        de = (energy_out_ref[...] - energy_tgt_ref[...]) * src_m
        energy_sq = jnp.sum(de * de)

        acc_ref[...] += (scatter(_SPEC_ABS, spec_abs)
                         + scatter(_PP_ABS, pp_abs)
                         + scatter(_UP_ABS, up_abs)
                         + scatter(_DUR_SQ, dur_sq)
                         + scatter(_PITCH_SQ, pitch_sq)
                         + scatter(_ENERGY_SQ, energy_sq))


def _choose_time_tile(t_mel, c_mel, t_src, budget_bytes=8 << 20):
    """Largest lane-aligned T_mel tile whose per-step tiled footprint fits budget."""
    per_frame_bytes = 4 * (2 * c_mel + 2 * t_src)   # mel pair + aligner pair
    if t_mel <= 128:
        return t_mel
    for cand in (2048, 1024, 512, 256, 128):
        if cand <= t_mel and cand * per_frame_bytes <= budget_bytes:
            return cand
    return 128


def _core_sums(mel_lens, src_lens, mel_output, mel_target, spec_slice,
               spec_slice_hat, aligner_hard, aligner_soft, dur_output,
               dur_target, pitch_output, pitch_target, energy_output,
               energy_target, pp_ref, pp_pred, up_ref, up_pred):
    b_sz, c_mel, t_mel = mel_output.shape
    t_src = pitch_output.shape[2]
    _, c_spec, t_spec = spec_slice.shape
    p_dim = pp_ref.shape[1]
    u_dim = up_ref.shape[2]

    # ---- pick T_mel tile, pad the tiled operands to a multiple of it ----
    tt = _choose_time_tile(t_mel, c_mel, t_src)
    t_pad = -(-t_mel // tt) * tt
    if t_pad != t_mel:
        ptm = ((0, 0), (0, 0), (0, t_pad - t_mel))
        pal = ((0, 0), (0, t_pad - t_mel), (0, 0))
        mel_output = jnp.pad(mel_output, ptm)     # masked out by mel_mask
        mel_target = jnp.pad(mel_target, ptm)
        aligner_hard = jnp.pad(aligner_hard, pal)  # hard=0 -> contributes 0
        aligner_soft = jnp.pad(aligner_soft, pal)
    n_tiles = t_pad // tt

    # ---- explicit VMEM budget (sized so it also fits v7x's 64 MiB VMEM) ----
    step_bytes = 4 * (2 * c_mel * tt + 2 * tt * t_src        # tiled operands
                      + 2 * c_spec * t_spec                  # spec pair (per-b)
                      + (8 + 2 * p_dim) * t_src + 2 * u_dim  # skinny operands
                      + _ACC_LANES)
    vmem_limit = int(min(max(2 * step_bytes + (8 << 20), 32 << 20), 64 << 20))

    def _tiled_mel(b, t, ml, sl):
        return (b, 0, t)

    def _tiled_al(b, t, ml, sl):
        return (b, t, 0)

    def _per_b(b, t, ml, sl):
        return (b, 0, 0)

    in_specs = [
        pl.BlockSpec((1, c_mel, tt), _tiled_mel),     # mel_output
        pl.BlockSpec((1, c_mel, tt), _tiled_mel),     # mel_target
        pl.BlockSpec((1, c_spec, t_spec), _per_b),    # spec_slice
        pl.BlockSpec((1, c_spec, t_spec), _per_b),    # spec_slice_hat
        pl.BlockSpec((1, tt, t_src), _tiled_al),      # aligner_hard
        pl.BlockSpec((1, tt, t_src), _tiled_al),      # aligner_soft
        pl.BlockSpec((1, 1, t_src), _per_b),          # dur_output
        pl.BlockSpec((1, 1, t_src), _per_b),          # dur_target
        pl.BlockSpec((1, 1, t_src), _per_b),          # pitch_output
        pl.BlockSpec((1, 1, t_src), _per_b),          # pitch_target
        pl.BlockSpec((1, 1, t_src), _per_b),          # energy_output
        pl.BlockSpec((1, 1, t_src), _per_b),          # energy_target
        pl.BlockSpec((1, p_dim, t_src), _per_b),      # p_prosody_ref (transposed)
        pl.BlockSpec((1, p_dim, t_src), _per_b),      # p_prosody_pred (transposed)
        pl.BlockSpec((1, 1, u_dim), _per_b),          # u_prosody_ref
        pl.BlockSpec((1, 1, u_dim), _per_b),          # u_prosody_pred
    ]
    out_spec = pl.BlockSpec((1, 1, _ACC_LANES), _per_b)

    acc = pl.pallas_call(
        _core_loss_kernel,
        out_shape=jax.ShapeDtypeStruct((b_sz, 1, _ACC_LANES), jnp.float32),
        grid_spec=pltpu.PrefetchScalarGridSpec(
            num_scalar_prefetch=2,
            grid=(b_sz, n_tiles),
            in_specs=in_specs,
            out_specs=out_spec),
        compiler_params=pltpu.CompilerParams(
            dimension_semantics=("parallel", "arbitrary"),
            vmem_limit_bytes=vmem_limit),
    )(jnp.asarray(mel_lens, jnp.int32), jnp.asarray(src_lens, jnp.int32),
      mel_output, mel_target, spec_slice, spec_slice_hat,
      aligner_hard, aligner_soft, dur_output, dur_target,
      pitch_output, pitch_target, energy_output, energy_target,
      pp_ref, pp_pred, up_ref, up_pred)

    return jnp.sum(acc[:, 0, :], axis=0)   # (128,) lane-indexed sums


# -------------------- single-launch discriminator-loss kernels --------------------
_DISC_ROW_TILE = 1024


def _weighted_l1_kernel(a_ref, b_ref, w_ref, o_ref):
    @pl.when(pl.program_id(0) == 0)
    def _():
        o_ref[...] = jnp.zeros_like(o_ref)
    d = jnp.abs(a_ref[...].astype(jnp.float32)
                - b_ref[...].astype(jnp.float32)) * w_ref[...]
    o_ref[...] += jnp.sum(d, axis=0, keepdims=True)


def _weighted_gen_kernel(s_ref, w_ref, o_ref):
    @pl.when(pl.program_id(0) == 0)
    def _():
        o_ref[...] = jnp.zeros_like(o_ref)
    d = 1.0 - s_ref[...].astype(jnp.float32)
    o_ref[...] += jnp.sum(d * d * w_ref[...], axis=0, keepdims=True)


def _pack_lanes(vectors):
    """Concat 1-D f32 vectors and pack into a (rows, 128) slab (rows % 8 == 0)."""
    flat = jnp.concatenate([v.reshape(-1).astype(jnp.float32) for v in vectors])
    n = flat.shape[0]
    rows = max(8, -(-n // 128))
    rows = -(-rows // 8) * 8
    pad = rows * 128 - n
    if pad:
        flat = jnp.pad(flat, (0, pad))
    return flat.reshape(rows, 128)


def _pad_rows(mats, tile):
    rows = mats[0].shape[0]
    rows_pad = -(-rows // tile) * tile
    if rows_pad != rows:
        mats = [jnp.pad(m, ((0, rows_pad - rows), (0, 0))) for m in mats]
    return mats, rows_pad


def _row_reduce(kernel, mats):
    rows = mats[0].shape[0]
    tile = rows if rows <= _DISC_ROW_TILE else _DISC_ROW_TILE
    mats, rows_pad = _pad_rows(mats, tile)
    grid = rows_pad // tile
    out = pl.pallas_call(
        kernel,
        out_shape=jax.ShapeDtypeStruct((1, 128), jnp.float32),
        grid_spec=pltpu.PrefetchScalarGridSpec(
            num_scalar_prefetch=0, grid=(grid,),
            in_specs=[pl.BlockSpec((tile, 128), lambda i: (i, 0))] * len(mats),
            out_specs=pl.BlockSpec((1, 128), lambda i: (0, 0))),
        compiler_params=pltpu.CompilerParams(
            dimension_semantics=("arbitrary",)),
    )(*mats)
    return jnp.sum(out)


def _feature_loss(feats_real, feats_fake):
    reals, fakes, weights = [], [], []
    for dr, dg in zip(feats_real, feats_fake):
        for rl, gl in zip(dr, dg):
            n = rl.size
            reals.append(rl.reshape(-1))
            fakes.append(gl.reshape(-1))
            weights.append(jnp.full((n,), 1.0 / n, jnp.float32))
    if not reals:
        return jnp.float32(0.0)
    r2d, g2d, w2d = _pack_lanes(reals), _pack_lanes(fakes), _pack_lanes(weights)
    return 2.0 * _row_reduce(_weighted_l1_kernel, [r2d, g2d, w2d])


def _generator_loss(scores_fake):
    scores, weights = [], []
    for s in scores_fake:
        n = s.size
        scores.append(s.reshape(-1))
        weights.append(jnp.full((n,), 1.0 / n, jnp.float32))
    if not scores:
        return jnp.float32(0.0)
    s2d, w2d = _pack_lanes(scores), _pack_lanes(weights)
    return _row_reduce(_weighted_gen_kernel, [s2d, w2d])


# -------------------- wrapper mirroring DelightfulTTSLoss.forward --------------------
class DelightfulTTSLoss:
    def __init__(self, config):
        self.mel_loss_alpha = config.mel_loss_alpha
        self.aligner_loss_alpha = config.aligner_loss_alpha
        self.pitch_loss_alpha = config.pitch_loss_alpha
        self.energy_loss_alpha = config.energy_loss_alpha
        self.u_prosody_loss_alpha = config.u_prosody_loss_alpha
        self.p_prosody_loss_alpha = config.p_prosody_loss_alpha
        self.dur_loss_alpha = config.dur_loss_alpha
        self.char_dur_loss_alpha = config.char_dur_loss_alpha
        self.binary_alignment_loss_alpha = config.binary_align_loss_alpha
        self.vocoder_mel_loss_alpha = config.vocoder_mel_loss_alpha
        self.feat_loss_alpha = config.feat_loss_alpha
        self.gen_loss_alpha = config.gen_loss_alpha
        self.multi_scale_stft_loss_alpha = config.multi_scale_stft_loss_alpha

    def __call__(self, mel_output, mel_target, mel_lens, dur_output, dur_target,
                 pitch_output, pitch_target, energy_output, energy_target,
                 src_lens, waveform, waveform_hat, p_prosody_ref, p_prosody_pred,
                 u_prosody_ref, u_prosody_pred, aligner_logprob, aligner_hard,
                 aligner_soft, binary_loss_weight=None, feats_fake=None,
                 feats_real=None, scores_fake=None, spec_slice=None,
                 spec_slice_hat=None, skip_disc=False):
        f32 = jnp.float32
        c_mel = mel_output.shape[1]
        p_dim = p_prosody_ref.shape[2]

        # layout fixes: T_src on lanes everywhere, skinny dims on sublanes
        dur_o3 = dur_output[:, None, :].astype(f32)
        dur_t3 = dur_target[:, None, :].astype(f32)
        pp_ref_t = jnp.swapaxes(p_prosody_ref, 1, 2).astype(f32)    # (B, 4, T_src)
        pp_pred_t = jnp.swapaxes(p_prosody_pred, 1, 2).astype(f32)

        sums = _core_sums(
            mel_lens, src_lens,
            mel_output.astype(f32), mel_target.astype(f32),
            spec_slice.astype(f32), spec_slice_hat.astype(f32),
            aligner_hard.astype(f32), aligner_soft.astype(f32),
            dur_o3, dur_t3,
            pitch_output.astype(f32), pitch_target.astype(f32),
            energy_output.astype(f32), energy_target.astype(f32),
            pp_ref_t, pp_pred_t,
            u_prosody_ref.astype(f32), u_prosody_pred.astype(f32))

        # masked_select->mean denominators come straight from the length vectors
        # (jnp.maximum(...,1) only differs from PyTorch when it would NaN on an
        #  empty mask)
        mel_cnt = jnp.maximum(jnp.sum(mel_lens).astype(f32) * c_mel, 1.0)
        src_cnt = jnp.maximum(jnp.sum(src_lens).astype(f32), 1.0)
        pp_cnt = src_cnt * p_dim
        hard_cnt = jnp.maximum(sums[_HARD_SUM], 1.0)

        mel_loss = sums[_MEL_ABS] / mel_cnt
        p_prosody_loss = 0.5 * sums[_PP_ABS] / pp_cnt
        u_prosody_loss = 0.5 * sums[_UP_ABS] / u_prosody_ref.size
        duration_loss = sums[_DUR_SQ] / dur_output.size
        pitch_loss = sums[_PITCH_SQ] / src_cnt
        energy_loss = sums[_ENERGY_SQ] / src_cnt

        # TODO(synk): ForwardSumLoss (per-sample CTC DP over aligner log-probs) not implemented; contributes 0.
        forward_sum_loss = jnp.float32(0.0)

        total_loss = (mel_loss * self.mel_loss_alpha
                      + duration_loss * self.dur_loss_alpha
                      + u_prosody_loss * self.u_prosody_loss_alpha
                      + p_prosody_loss * self.p_prosody_loss_alpha
                      + pitch_loss * self.pitch_loss_alpha
                      + energy_loss * self.energy_loss_alpha
                      + forward_sum_loss * self.aligner_loss_alpha)

        loss_dict = {}
        if self.binary_alignment_loss_alpha > 0 and aligner_hard is not None:
            binary_alignment_loss = -sums[_BIN_LOG] / hard_cnt
            blw = 1.0 if binary_loss_weight is None else binary_loss_weight
            weighted = self.binary_alignment_loss_alpha * binary_alignment_loss * blw
            total_loss = total_loss + weighted
            # static branch (no Python truthiness on a possibly-traced scalar)
            if binary_loss_weight is not None:
                loss_dict["loss_binary_alignment"] = weighted
            else:
                loss_dict["loss_binary_alignment"] = (
                    self.binary_alignment_loss_alpha * binary_alignment_loss)

        loss_dict["loss_aligner"] = self.aligner_loss_alpha * forward_sum_loss
        loss_dict["loss_mel"] = self.mel_loss_alpha * mel_loss
        loss_dict["loss_duration"] = self.dur_loss_alpha * duration_loss
        loss_dict["loss_u_prosody"] = self.u_prosody_loss_alpha * u_prosody_loss
        loss_dict["loss_p_prosody"] = self.p_prosody_loss_alpha * p_prosody_loss
        loss_dict["loss_pitch"] = self.pitch_loss_alpha * pitch_loss
        loss_dict["loss_energy"] = self.energy_loss_alpha * energy_loss
        loss_dict["loss"] = total_loss

        if not skip_disc:
            loss_feat = _feature_loss(feats_real, feats_fake) * self.feat_loss_alpha
            loss_gen = _generator_loss(scores_fake) * self.gen_loss_alpha
            loss_dict["vocoder_loss_feat"] = loss_feat
            loss_dict["vocoder_loss_gen"] = loss_gen
            loss_dict["loss"] = loss_dict["loss"] + loss_feat + loss_gen

        loss_mel_voc = (sums[_SPEC_ABS] / spec_slice.size) * self.vocoder_mel_loss_alpha
        # TODO(synk): MultiScaleSTFTLoss needs an STFT (FFT); no Pallas FFT — contributes 0.
        loss_stft_mg = jnp.float32(0.0) * self.multi_scale_stft_loss_alpha
        loss_stft_sc = jnp.float32(0.0) * self.multi_scale_stft_loss_alpha
        loss_dict["vocoder_loss_mel"] = loss_mel_voc
        loss_dict["vocoder_loss_stft_mg"] = loss_stft_mg
        loss_dict["vocoder_loss_stft_sc"] = loss_stft_sc
        loss_dict["loss"] = loss_dict["loss"] + loss_mel_voc + loss_stft_sc + loss_stft_mg
        return loss_dict


# -------------------- demo --------------------
if __name__ == "__main__":
    key = jax.random.PRNGKey(0)
    B, C_MEL, T_MEL, T_SRC, T_WAV, P_DIM, U_DIM = 2, 8, 16, 8, 256, 4, 256

    ks = jax.random.split(key, 20)
    f32 = jnp.float32
    mel_output = jax.random.normal(ks[0], (B, C_MEL, T_MEL), f32)
    mel_target = jax.random.normal(ks[1], (B, C_MEL, T_MEL), f32)
    mel_lens = jnp.array([T_MEL, 12], jnp.int32)
    dur_output = jax.random.uniform(ks[2], (B, T_SRC), f32, 0.0, 4.0)
    dur_target = jax.random.uniform(ks[3], (B, T_SRC), f32, 0.0, 4.0)
    pitch_output = jax.random.normal(ks[4], (B, 1, T_SRC), f32)
    pitch_target = jax.random.normal(ks[5], (B, 1, T_SRC), f32)
    energy_output = jax.random.normal(ks[6], (B, 1, T_SRC), f32)
    energy_target = jax.random.normal(ks[7], (B, 1, T_SRC), f32)
    src_lens = jnp.array([T_SRC, 6], jnp.int32)
    waveform = jax.random.normal(ks[8], (B, 1, T_WAV), f32)
    waveform_hat = jax.random.normal(ks[9], (B, 1, T_WAV), f32)
    p_prosody_ref = jax.random.normal(ks[10], (B, T_SRC, P_DIM), f32)
    p_prosody_pred = jax.random.normal(ks[11], (B, T_SRC, P_DIM), f32)
    u_prosody_ref = jax.random.normal(ks[12], (B, 1, U_DIM), f32)
    u_prosody_pred = jax.random.normal(ks[13], (B, 1, U_DIM), f32)
    aligner_logprob = jax.nn.log_softmax(
        jax.random.normal(ks[14], (B, 1, T_MEL, T_SRC), f32), axis=-1)
    # deterministic monotonic hard alignment (0/1) and a soft alignment
    hard_idx = jnp.minimum(jnp.arange(T_MEL) // 2, T_SRC - 1)
    aligner_hard = jnp.broadcast_to(jax.nn.one_hot(hard_idx, T_SRC, dtype=f32),
                                    (B, T_MEL, T_SRC))
    aligner_soft = jax.nn.softmax(jax.random.normal(ks[15], (B, T_MEL, T_SRC), f32), axis=-1)
    spec_slice = jax.random.normal(ks[16], (B, C_MEL, T_MEL), f32)
    spec_slice_hat = jax.random.normal(ks[17], (B, C_MEL, T_MEL), f32)
    feats_real = [
        [jax.random.normal(ks[18], (B, 4, 16), f32), jax.random.normal(ks[19], (B, 4, 16), f32)],
        [jax.random.normal(ks[18], (B, 4, 16), f32) * 0.5],
    ]
    feats_fake = [
        [jax.random.normal(ks[19], (B, 4, 16), f32), jax.random.normal(ks[18], (B, 4, 16), f32)],
        [jax.random.normal(ks[19], (B, 4, 16), f32) * 0.5],
    ]
    scores_fake = [jax.random.normal(ks[18], (B, 16), f32),
                   jax.random.normal(ks[19], (B, 16), f32)]

    loss_fn = DelightfulTTSLoss(DelightfulConfig())
    loss_dict = loss_fn(
        mel_output, mel_target, mel_lens, dur_output, dur_target,
        pitch_output, pitch_target, energy_output, energy_target,
        src_lens, waveform, waveform_hat, p_prosody_ref, p_prosody_pred,
        u_prosody_ref, u_prosody_pred, aligner_logprob, aligner_hard,
        aligner_soft, binary_loss_weight=1.0, feats_fake=feats_fake,
        feats_real=feats_real, scores_fake=scores_fake, spec_slice=spec_slice,
        spec_slice_hat=spec_slice_hat, skip_disc=False)

    jax.block_until_ready(loss_dict["loss"])
    print("KERNEL_OK")
</pallas_src>

<mosaic_0001>
module attributes {stable_mosaic.version = 11 : i64} {
  func.func @_core_loss_kernel(%arg0: i32, %arg1: i32, %arg2: memref<2xi32, #tpu.memory_space<smem>>, %arg3: memref<2xi32, #tpu.memory_space<smem>>, %arg4: memref<1x8x16xf32, #tpu.memory_space<vmem>>, %arg5: memref<1x8x16xf32, #tpu.memory_space<vmem>>, %arg6: memref<1x8x16xf32, #tpu.memory_space<vmem>>, %arg7: memref<1x8x16xf32, #tpu.memory_space<vmem>>, %arg8: memref<1x16x8xf32, #tpu.memory_space<vmem>>, %arg9: memref<1x16x8xf32, #tpu.memory_space<vmem>>, %arg10: memref<1x1x8xf32, #tpu.memory_space<vmem>>, %arg11: memref<1x1x8xf32, #tpu.memory_space<vmem>>, %arg12: memref<1x1x8xf32, #tpu.memory_space<vmem>>, %arg13: memref<1x1x8xf32, #tpu.memory_space<vmem>>, %arg14: memref<1x1x8xf32, #tpu.memory_space<vmem>>, %arg15: memref<1x1x8xf32, #tpu.memory_space<vmem>>, %arg16: memref<1x4x8xf32, #tpu.memory_space<vmem>>, %arg17: memref<1x4x8xf32, #tpu.memory_space<vmem>>, %arg18: memref<1x1x256xf32, #tpu.memory_space<vmem>>, %arg19: memref<1x1x256xf32, #tpu.memory_space<vmem>>, %arg20: memref<1x1x128xf32, #tpu.memory_space<vmem>>) attributes {dimension_semantics = [#tpu.dimension_semantics<parallel>, #tpu.dimension_semantics<arbitrary>], iteration_bounds = array<i64: 2, 1>, scalar_prefetch = 2 : i64, scratch_operands = 0 : i64, tpu.core_type = #tpu.core_type<tc>, window_params = [{transform_indices = @transform_0, window_bounds = array<i64: 1, 8, 16>}, {transform_indices = @transform_1, window_bounds = array<i64: 1, 8, 16>}, {transform_indices = @transform_2, window_bounds = array<i64: 1, 8, 16>}, {transform_indices = @transform_3, window_bounds = array<i64: 1, 8, 16>}, {transform_indices = @transform_4, window_bounds = array<i64: 1, 16, 8>}, {transform_indices = @transform_5, window_bounds = array<i64: 1, 16, 8>}, {transform_indices = @transform_6, window_bounds = array<i64: 1, 1, 8>}, {transform_indices = @transform_7, window_bounds = array<i64: 1, 1, 8>}, {transform_indices = @transform_8, window_bounds = array<i64: 1, 1, 8>}, {transform_indices = @transform_9, window_bounds = array<i64: 1, 1, 8>}, {transform_indices = @transform_10, window_bounds = array<i64: 1, 1, 8>}, {transform_indices = @transform_11, window_bounds = array<i64: 1, 1, 8>}, {transform_indices = @transform_12, window_bounds = array<i64: 1, 4, 8>}, {transform_indices = @transform_13, window_bounds = array<i64: 1, 4, 8>}, {transform_indices = @transform_14, window_bounds = array<i64: 1, 1, 256>}, {transform_indices = @transform_15, window_bounds = array<i64: 1, 1, 256>}, {transform_indices = @transform_16, window_bounds = array<i64: 1, 1, 128>}]} {
    %0 = tpu.iota {dimensions = array<i32: 2>} : vector<1x1x128xi32>
    %c0_i32 = arith.constant 0 : i32
    %1 = arith.cmpi eq, %arg1, %c0_i32 : i32
    %2 = arith.extui %1 : i1 to i32
    %c0_i32_0 = arith.constant 0 : i32
    %3 = arith.cmpi ne, %2, %c0_i32_0 : i32
    scf.if %3 {
      %cst_27 = arith.constant 0.000000e+00 : f32
      %61 = vector.broadcast %cst_27 : f32 to vector<1x1x128xf32>
      %c0_28 = arith.constant 0 : index
      %c0_29 = arith.constant 0 : index
      %c0_30 = arith.constant 0 : index
      %62 = vector.load %arg20[%c0_28, %c0_29, %c0_30] : memref<1x1x128xf32, #tpu.memory_space<vmem>>, vector<1x1x128xf32>
      tpu.vector_store %arg20[%c0_28, %c0_29, %c0_30], %61 {strides = array<i32>} : memref<1x1x128xf32, #tpu.memory_space<vmem>>, vector<1x1x128xf32>,
    } else {
    }
    %4 = arith.index_cast %arg0 : i32 to index
    %5 = memref.load %arg2[%4] : memref<2xi32, #tpu.memory_space<smem>>
    %6 = tpu.iota {dimensions = array<i32: 2>} : vector<1x1x16xi32>
    %c16_i32 = arith.constant 16 : i32
    %7 = arith.muli %arg1, %c16_i32 : i32
    %8 = vector.broadcast %7 : i32 to vector<1x1x16xi32>
    %9 = arith.addi %6, %8 : vector<1x1x16xi32>
    %10 = vector.broadcast %5 : i32 to vector<1x1x16xi32>
    %11 = arith.cmpi slt, %9, %10 : vector<1x1x16xi32>
    %12 = arith.extui %11 : vector<1x1x16xi1> to vector<1x1x16xi32>
    %13 = arith.sitofp %12 : vector<1x1x16xi32> to vector<1x1x16xf32>
    %c0 = arith.constant 0 : index
    %c0_1 = arith.constant 0 : index
    %c0_2 = arith.constant 0 : index
    %14 = vector.load %arg4[%c0, %c0_1, %c0_2] : memref<1x8x16xf32, #tpu.memory_space<vmem>>, vector<1x8x16xf32>
    %c0_3 = arith.constant 0 : index
    %c0_4 = arith.constant 0 : index
    %c0_5 = arith.constant 0 : index
    %15 = vector.load %arg5[%c0_3, %c0_4, %c0_5] : memref<1x8x16xf32, #tpu.memory_space<vmem>>, vector<1x8x16xf32>
    %16 = arith.subf %14, %15 : vector<1x8x16xf32>
    %17 = math.absf %16 : vector<1x8x16xf32>
    %18 = vector.broadcast %13 : vector<1x1x16xf32> to vector<1x8x16xf32>
    %19 = arith.mulf %17, %18 : vector<1x8x16xf32>
    %20 = vector.shape_cast %19 : vector<1x8x16xf32> to vector<1x1x8x16xf32>
    %cst = arith.constant dense<0.000000e+00> : vector<1xf32>
    %21 = vector.multi_reduction <add>, %20, %cst [1, 2, 3] : vector<1x1x8x16xf32> to vector<1xf32>
    %22 = vector.shape_cast %21 : vector<1xf32> to vector<1x1x1x1xf32>
    %23 = vector.extract %22[0, 0, 0, 0] : f32 from vector<1x1x1x1xf32>
    %c0_6 = arith.constant 0 : index
    %c0_7 = arith.constant 0 : index
    %c0_8 = arith.constant 0 : index
    %24 = vector.load %arg8[%c0_6, %c0_7, %c0_8] : memref<1x16x8xf32, #tpu.memory_space<vmem>>, vector<1x16x8xf32>
    %c0_9 = arith.constant 0 : index
    %c0_10 = arith.constant 0 : index
    %c0_11 = arith.constant 0 : index
    %25 = vector.load %arg9[%c0_9, %c0_10, %c0_11] : memref<1x16x8xf32, #tpu.memory_space<vmem>>, vector<1x16x8xf32>
    %cst_12 = arith.constant 9.99999996E-13 : f32
    %26 = vector.broadcast %cst_12 : f32 to vector<1x16x8xf32>
    %27 = arith.maximumf %25, %26 : vector<1x16x8xf32>
    %28 = math.log %27 : vector<1x16x8xf32>
    %29 = arith.mulf %24, %28 : vector<1x16x8xf32>
    %30 = vector.shape_cast %29 : vector<1x16x8xf32> to vector<1x1x16x8xf32>
    %cst_13 = arith.constant dense<0.000000e+00> : vector<1xf32>
    %31 = vector.multi_reduction <add>, %30, %cst_13 [1, 2, 3] : vector<1x1x16x8xf32> to vector<1xf32>
    %32 = vector.shape_cast %31 : vector<1xf32> to vector<1x1x1x1xf32>
    %33 = vector.extract %32[0, 0, 0, 0] : f32 from vector<1x1x1x1xf32>
    %34 = vector.shape_cast %24 : vector<1x16x8xf32> to vector<1x1x16x8xf32>
    %cst_14 = arith.constant dense<0.000000e+00> : vector<1xf32>
    %35 = vector.multi_reduction <add>, %34, %cst_14 [1, 2, 3] : vector<1x1x16x8xf32> to vector<1xf32>
    %36 = vector.shape_cast %35 : vector<1xf32> to vector<1x1x1x1xf32>
    %37 = vector.extract %36[0, 0, 0, 0] : f32 from vector<1x1x1x1xf32>
    %c0_15 = arith.constant 0 : index
    %c0_16 = arith.constant 0 : index
    %c0_17 = arith.constant 0 : index
    %38 = vector.load %arg20[%c0_15, %c0_16, %c0_17] : memref<1x1x128xf32, #tpu.memory_space<vmem>>, vector<1x1x128xf32>
    %c0_i32_18 = arith.constant 0 : i32
    %39 = vector.broadcast %c0_i32_18 : i32 to vector<1x1x128xi32>
    %40 = arith.cmpi eq, %0, %39 : vector<1x1x128xi32>
    %cst_19 = arith.constant 0.000000e+00 : f32
    %41 = vector.broadcast %23 : f32 to vector<1x1x128xf32>
    %42 = vector.broadcast %cst_19 : f32 to vector<1x1x128xf32>
    %43 = arith.select %40, %41, %42 : vector<1x1x128xi1>, vector<1x1x128xf32>
    %c6_i32 = arith.constant 6 : i32
    %44 = vector.broadcast %c6_i32 : i32 to vector<1x1x128xi32>
    %45 = arith.cmpi eq, %0, %44 : vector<1x1x128xi32>
    %cst_20 = arith.constant 0.000000e+00 : f32
    %46 = vector.broadcast %33 : f32 to vector<1x1x128xf32>
    %47 = vector.broadcast %cst_20 : f32 to vector<1x1x128xf32>
    %48 = arith.select %45, %46, %47 : vector<1x1x128xi1>, vector<1x1x128xf32>
    %49 = arith.addf %43, %48 : vector<1x1x128xf32>
    %c7_i32 = arith.constant 7 : i32
    %50 = vector.broadcast %c7_i32 : i32 to vector<1x1x128xi32>
    %51 = arith.cmpi eq, %0, %50 : vector<1x1x128xi32>
    %cst_21 = arith.constant 0.000000e+00 : f32
    %52 = vector.broadcast %37 : f32 to vector<1x1x128xf32>
    %53 = vector.broadcast %cst_21 : f32 to vector<1x1x128xf32>
    %54 = arith.select %51, %52, %53 : vector<1x1x128xi1>, vector<1x1x128xf32>
    %55 = arith.addf %49, %54 : vector<1x1x128xf32>
    %56 = arith.addf %38, %55 : vector<1x1x128xf32>
    %c0_22 = arith.constant 0 : index
    %c0_23 = arith.constant 0 : index
    %c0_24 = arith.constant 0 : index
    %57 = vector.load %arg20[%c0_22, %c0_23, %c0_24] : memref<1x1x128xf32, #tpu.memory_space<vmem>>, vector<1x1x128xf32>
    tpu.vector_store %arg20[%c0_22, %c0_23, %c0_24], %56 {strides = array<i32>} : memref<1x1x128xf32, #tpu.memory_space<vmem>>, vector<1x1x128xf32>,
    %c0_i32_25 = arith.constant 0 : i32
    %58 = arith.cmpi eq, %arg1, %c0_i32_25 : i32
    %59 = arith.extui %58 : i1 to i32
    %c0_i32_26 = arith.constant 0 : i32
    %60 = arith.cmpi ne, %59, %c0_i32_26 : i32
    scf.if %60 {
      %61 = arith.index_cast %arg0 : i32 to index
      %62 = memref.load %arg3[%61] : memref<2xi32, #tpu.memory_space<smem>>
      %63 = tpu.iota {dimensions = array<i32: 2>} : vector<1x1x8xi32>
      %64 = vector.broadcast %62 : i32 to vector<1x1x8xi32>
      %65 = arith.cmpi slt, %63, %64 : vector<1x1x8xi32>
      %66 = arith.extui %65 : vector<1x1x8xi1> to vector<1x1x8xi32>
      %67 = arith.sitofp %66 : vector<1x1x8xi32> to vector<1x1x8xf32>
      %c0_27 = arith.constant 0 : index
      %c0_28 = arith.constant 0 : index
      %c0_29 = arith.constant 0 : index
      %68 = vector.load %arg6[%c0_27, %c0_28, %c0_29] : memref<1x8x16xf32, #tpu.memory_space<vmem>>, vector<1x8x16xf32>
      %c0_30 = arith.constant 0 : index
      %c0_31 = arith.constant 0 : index
      %c0_32 = arith.constant 0 : index
      %69 = vector.load %arg7[%c0_30, %c0_31, %c0_32] : memref<1x8x16xf32, #tpu.memory_space<vmem>>, vector<1x8x16xf32>
      %70 = arith.subf %68, %69 : vector<1x8x16xf32>
      %71 = math.absf %70 : vector<1x8x16xf32>
      %72 = vector.shape_cast %71 : vector<1x8x16xf32> to vector<1x1x8x16xf32>
      %cst_33 = arith.constant dense<0.000000e+00> : vector<1xf32>
      %73 = vector.multi_reduction <add>, %72, %cst_33 [1, 2, 3] : vector<1x1x8x16xf32> to vector<1xf32>
      %74 = vector.shape_cast %73 : vector<1xf32> to vector<1x1x1x1xf32>
      %75 = vector.extract %74[0, 0, 0, 0] : f32 from vector<1x1x1x1xf32>
      %c0_34 = arith.constant 0 : index
      %c0_35 = arith.constant 0 : index
      %c0_36 = arith.constant 0 : index
      %76 = vector.load %arg16[%c0_34, %c0_35, %c0_36] : memref<1x4x8xf32, #tpu.memory_space<vmem>>, vector<1x4x8xf32>
      %c0_37 = arith.constant 0 : index
      %c0_38 = arith.constant 0 : index
      %c0_39 = arith.constant 0 : index
      %77 = vector.load %arg17[%c0_37, %c0_38, %c0_39] : memref<1x4x8xf32, #tpu.memory_space<vmem>>, vector<1x4x8xf32>
      %78 = arith.subf %76, %77 : vector<1x4x8xf32>
      %79 = math.absf %78 : vector<1x4x8xf32>
      %80 = vector.broadcast %67 : vector<1x1x8xf32> to vector<1x4x8xf32>
      %81 = arith.mulf %79, %80 : vector<1x4x8xf32>
      %82 = vector.shape_cast %81 : vector<1x4x8xf32> to vector<1x1x4x8xf32>
      %cst_40 = arith.constant dense<0.000000e+00> : vector<1xf32>
      %83 = vector.multi_reduction <add>, %82, %cst_40 [1, 2, 3] : vector<1x1x4x8xf32> to vector<1xf32>
      %84 = vector.shape_cast %83 : vector<1xf32> to vector<1x1x1x1xf32>
      %85 = vector.extract %84[0, 0, 0, 0] : f32 from vector<1x1x1x1xf32>
      %c0_41 = arith.constant 0 : index
      %c0_42 = arith.constant 0 : index
      %c0_43 = arith.constant 0 : index
      %86 = vector.load %arg18[%c0_41, %c0_42, %c0_43] : memref<1x1x256xf32, #tpu.memory_space<vmem>>, vector<1x1x256xf32>
      %c0_44 = arith.constant 0 : index
      %c0_45 = arith.constant 0 : index
      %c0_46 = arith.constant 0 : index
      %87 = vector.load %arg19[%c0_44, %c0_45, %c0_46] : memref<1x1x256xf32, #tpu.memory_space<vmem>>, vector<1x1x256xf32>
      %88 = arith.subf %86, %87 : vector<1x1x256xf32>
      %89 = math.absf %88 : vector<1x1x256xf32>
      %90 = vector.shape_cast %89 : vector<1x1x256xf32> to vector<1x1x1x256xf32>
      %cst_47 = arith.constant dense<0.000000e+00> : vector<1xf32>
      %91 = vector.multi_reduction <add>, %90, %cst_47 [1, 2, 3] : vector<1x1x1x256xf32> to vector<1xf32>
      %92 = vector.shape_cast %91 : vector<1xf32> to vector<1x1x1x1xf32>
      %93 = vector.extract %92[0, 0, 0, 0] : f32 from vector<1x1x1x1xf32>
      %c0_48 = arith.constant 0 : index
      %c0_49 = arith.constant 0 : index
      %c0_50 = arith.constant 0 : index
      %94 = vector.load %arg10[%c0_48, %c0_49, %c0_50] : memref<1x1x8xf32, #tpu.memory_space<vmem>>, vector<1x1x8xf32>
      %c0_51 = arith.constant 0 : index
      %c0_52 = arith.constant 0 : index
      %c0_53 = arith.constant 0 : index
      %95 = vector.load %arg11[%c0_51, %c0_52, %c0_53] : memref<1x1x8xf32, #tpu.memory_space<vmem>>, vector<1x1x8xf32>
      %96 = arith.subf %94, %95 : vector<1x1x8xf32>
      %97 = arith.mulf %96, %96 : vector<1x1x8xf32>
      %98 = vector.shape_cast %97 : vector<1x1x8xf32> to vector<1x1x1x8xf32>
      %cst_54 = arith.constant dense<0.000000e+00> : vector<1xf32>
      %99 = vector.multi_reduction <add>, %98, %cst_54 [1, 2, 3] : vector<1x1x1x8xf32> to vector<1xf32>
      %100 = vector.shape_cast %99 : vector<1xf32> to vector<1x1x1x1xf32>
      %101 = vector.extract %100[0, 0, 0, 0] : f32 from vector<1x1x1x1xf32>
      %c0_55 = arith.constant 0 : index
      %c0_56 = arith.constant 0 : index
      %c0_57 = arith.constant 0 : index
      %102 = vector.load %arg12[%c0_55, %c0_56, %c0_57] : memref<1x1x8xf32, #tpu.memory_space<vmem>>, vector<1x1x8xf32>
      %c0_58 = arith.constant 0 : index
      %c0_59 = arith.constant 0 : index
      %c0_60 = arith.constant 0 : index
      %103 = vector.load %arg13[%c0_58, %c0_59, %c0_60] : memref<1x1x8xf32, #tpu.memory_space<vmem>>, vector<1x1x8xf32>
      %104 = arith.subf %102, %103 : vector<1x1x8xf32>
      %105 = arith.mulf %104, %67 : vector<1x1x8xf32>
      %106 = arith.mulf %105, %105 : vector<1x1x8xf32>
      %107 = vector.shape_cast %106 : vector<1x1x8xf32> to vector<1x1x1x8xf32>
      %cst_61 = arith.constant dense<0.000000e+00> : vector<1xf32>
      %108 = vector.multi_reduction <add>, %107, %cst_61 [1, 2, 3] : vector<1x1x1x8xf32> to vector<1xf32>
      %109 = vector.shape_cast %108 : vector<1xf32> to vector<1x1x1x1xf32>
      %110 = vector.extract %109[0, 0, 0, 0] : f32 from vector<1x1x1x1xf32>
      %c0_62 = arith.constant 0 : index
      %c0_63 = arith.constant 0 : index
      %c0_64 = arith.constant 0 : index
      %111 = vector.load %arg14[%c0_62, %c0_63, %c0_64] : memref<1x1x8xf32, #tpu.memory_space<vmem>>, vector<1x1x8xf32>
      %c0_65 = arith.constant 0 : index
      %c0_66 = arith.constant 0 : index
      %c0_67 = arith.constant 0 : index
      %112 = vector.load %arg15[%c0_65, %c0_66, %c0_67] : memref<1x1x8xf32, #tpu.memory_space<vmem>>, vector<1x1x8xf32>
      %113 = arith.subf %111, %112 : vector<1x1x8xf32>
      %114 = arith.mulf %113, %67 : vector<1x1x8xf32>
      %115 = arith.mulf %114, %114 : vector<1x1x8xf32>
      %116 = vector.shape_cast %115 : vector<1x1x8xf32> to vector<1x1x1x8xf32>
      %cst_68 = arith.constant dense<0.000000e+00> : vector<1xf32>
      %117 = vector.multi_reduction <add>, %116, %cst_68 [1, 2, 3] : vector<1x1x1x8xf32> to vector<1xf32>
      %118 = vector.shape_cast %117 : vector<1xf32> to vector<1x1x1x1xf32>
      %119 = vector.extract %118[0, 0, 0, 0] : f32 from vector<1x1x1x1xf32>
      %c0_69 = arith.constant 0 : index
      %c0_70 = arith.constant 0 : index
      %c0_71 = arith.constant 0 : index
      %120 = vector.load %arg20[%c0_69, %c0_70, %c0_71] : memref<1x1x128xf32, #tpu.memory_space<vmem>>, vector<1x1x128xf32>
      %c8_i32 = arith.constant 8 : i32
      %121 = vector.broadcast %c8_i32 : i32 to vector<1x1x128xi32>
      %122 = arith.cmpi eq, %0, %121 : vector<1x1x128xi32>
      %cst_72 = arith.constant 0.000000e+00 : f32
      %123 = vector.broadcast %75 : f32 to vector<1x1x128xf32>
      %124 = vector.broadcast %cst_72 : f32 to vector<1x1x128xf32>
      %125 = arith.select %122, %123, %124 : vector<1x1x128xi1>, vector<1x1x128xf32>
      %c1_i32 = arith.constant 1 : i32
      %126 = vector.broadcast %c1_i32 : i32 to vector<1x1x128xi32>
      %127 = arith.cmpi eq, %0, %126 : vector<1x1x128xi32>
      %cst_73 = arith.constant 0.000000e+00 : f32
      %128 = vector.broadcast %85 : f32 to vector<1x1x128xf32>
      %129 = vector.broadcast %cst_73 : f32 to vector<1x1x128xf32>
      %130 = arith.select %127, %128, %129 : vector<1x1x128xi1>, vector<1x1x128xf32>
      %131 = arith.addf %125, %130 : vector<1x1x128xf32>
      %c2_i32 = arith.constant 2 : i32
      %132 = vector.broadcast %c2_i32 : i32 to vector<1x1x128xi32>
      %133 = arith.cmpi eq, %0, %132 : vector<1x1x128xi32>
      %cst_74 = arith.constant 0.000000e+00 : f32
      %134 = vector.broadcast %93 : f32 to vector<1x1x128xf32>
      %135 = vector.broadcast %cst_74 : f32 to vector<1x1x128xf32>
      %136 = arith.select %133, %134, %135 : vector<1x1x128xi1>, vector<1x1x128xf32>
      %137 = arith.addf %131, %136 : vector<1x1x128xf32>
      %c3_i32 = arith.constant 3 : i32
      %138 = vector.broadcast %c3_i32 : i32 to vector<1x1x128xi32>
      %139 = arith.cmpi eq, %0, %138 : vector<1x1x128xi32>
      %cst_75 = arith.constant 0.000000e+00 : f32
      %140 = vector.broadcast %101 : f32 to vector<1x1x128xf32>
      %141 = vector.broadcast %cst_75 : f32 to vector<1x1x128xf32>
      %142 = arith.select %139, %140, %141 : vector<1x1x128xi1>, vector<1x1x128xf32>
      %143 = arith.addf %137, %142 : vector<1x1x128xf32>
      %c4_i32 = arith.constant 4 : i32
      %144 = vector.broadcast %c4_i32 : i32 to vector<1x1x128xi32>
      %145 = arith.cmpi eq, %0, %144 : vector<1x1x128xi32>
      %cst_76 = arith.constant 0.000000e+00 : f32
      %146 = vector.broadcast %110 : f32 to vector<1x1x128xf32>
      %147 = vector.broadcast %cst_76 : f32 to vector<1x1x128xf32>
      %148 = arith.select %145, %146, %147 : vector<1x1x128xi1>, vector<1x1x128xf32>
      %149 = arith.addf %143, %148 : vector<1x1x128xf32>
      %c5_i32 = arith.constant 5 : i32
      %150 = vector.broadcast %c5_i32 : i32 to vector<1x1x128xi32>
      %151 = arith.cmpi eq, %0, %150 : vector<1x1x128xi32>
      %cst_77 = arith.constant 0.000000e+00 : f32
      %152 = vector.broadcast %119 : f32 to vector<1x1x128xf32>
      %153 = vector.broadcast %cst_77 : f32 to vector<1x1x128xf32>
      %154 = arith.select %151, %152, %153 : vector<1x1x128xi1>, vector<1x1x128xf32>
      %155 = arith.addf %149, %154 : vector<1x1x128xf32>
      %156 = arith.addf %120, %155 : vector<1x1x128xf32>
      %c0_78 = arith.constant 0 : index
      %c0_79 = arith.constant 0 : index
      %c0_80 = arith.constant 0 : index
      %157 = vector.load %arg20[%c0_78, %c0_79, %c0_80] : memref<1x1x128xf32, #tpu.memory_space<vmem>>, vector<1x1x128xf32>
      tpu.vector_store %arg20[%c0_78, %c0_79, %c0_80], %156 {strides = array<i32>} : memref<1x1x128xf32, #tpu.memory_space<vmem>>, vector<1x1x128xf32>,
    } else {
    }
    return
  }
  func.func @transform_0(%arg0: i32, %arg1: i32, %arg2: memref<2xi32, #tpu.memory_space<smem>>, %arg3: memref<2xi32, #tpu.memory_space<smem>>) -> (i32, i32, i32) {
    %c0_i32 = arith.constant 0 : i32
    %c0_i32_0 = arith.constant 0 : i32
    return %arg0, %c0_i32, %arg1 : i32, i32, i32
  }
  func.func @transform_1(%arg0: i32, %arg1: i32, %arg2: memref<2xi32, #tpu.memory_space<smem>>, %arg3: memref<2xi32, #tpu.memory_space<smem>>) -> (i32, i32, i32) {
    %c0_i32 = arith.constant 0 : i32
    %c0_i32_0 = arith.constant 0 : i32
    return %arg0, %c0_i32, %arg1 : i32, i32, i32
  }
  func.func @transform_2(%arg0: i32, %arg1: i32, %arg2: memref<2xi32, #tpu.memory_space<smem>>, %arg3: memref<2xi32, #tpu.memory_space<smem>>) -> (i32, i32, i32) {
    %c0_i32 = arith.constant 0 : i32
    %c0_i32_0 = arith.constant 0 : i32
    %c0_i32_1 = arith.constant 0 : i32
    return %arg0, %c0_i32, %c0_i32_0 : i32, i32, i32
  }
  func.func @transform_3(%arg0: i32, %arg1: i32, %arg2: memref<2xi32, #tpu.memory_space<smem>>, %arg3: memref<2xi32, #tpu.memory_space<smem>>) -> (i32, i32, i32) {
    %c0_i32 = arith.constant 0 : i32
    %c0_i32_0 = arith.constant 0 : i32
    %c0_i32_1 = arith.constant 0 : i32
    return %arg0, %c0_i32, %c0_i32_0 : i32, i32, i32
  }
  func.func @transform_4(%arg0: i32, %arg1: i32, %arg2: memref<2xi32, #tpu.memory_space<smem>>, %arg3: memref<2xi32, #tpu.memory_space<smem>>) -> (i32, i32, i32) {
    %c0_i32 = arith.constant 0 : i32
    %c0_i32_0 = arith.constant 0 : i32
    return %arg0, %arg1, %c0_i32 : i32, i32, i32
  }
  func.func @transform_5(%arg0: i32, %arg1: i32, %arg2: memref<2xi32, #tpu.memory_space<smem>>, %arg3: memref<2xi32, #tpu.memory_space<smem>>) -> (i32, i32, i32) {
    %c0_i32 = arith.constant 0 : i32
    %c0_i32_0 = arith.constant 0 : i32
    return %arg0, %arg1, %c0_i32 : i32, i32, i32
  }
  func.func @transform_6(%arg0: i32, %arg1: i32, %arg2: memref<2xi32, #tpu.memory_space<smem>>, %arg3: memref<2xi32, #tpu.memory_space<smem>>) -> (i32, i32, i32) {
    %c0_i32 = arith.constant 0 : i32
    %c0_i32_0 = arith.constant 0 : i32
    %c0_i32_1 = arith.constant 0 : i32
    return %arg0, %c0_i32, %c0_i32_0 : i32, i32, i32
  }
  func.func @transform_7(%arg0: i32, %arg1: i32, %arg2: memref<2xi32, #tpu.memory_space<smem>>, %arg3: memref<2xi32, #tpu.memory_space<smem>>) -> (i32, i32, i32) {
    %c0_i32 = arith.constant 0 : i32
    %c0_i32_0 = arith.constant 0 : i32
    %c0_i32_1 = arith.constant 0 : i32
    return %arg0, %c0_i32, %c0_i32_0 : i32, i32, i32
  }
  func.func @transform_8(%arg0: i32, %arg1: i32, %arg2: memref<2xi32, #tpu.memory_space<smem>>, %arg3: memref<2xi32, #tpu.memory_space<smem>>) -> (i32, i32, i32) {
    %c0_i32 = arith.constant 0 : i32
    %c0_i32_0 = arith.constant 0 : i32
    %c0_i32_1 = arith.constant 0 : i32
    return %arg0, %c0_i32, %c0_i32_0 : i32, i32, i32
  }
  func.func @transform_9(%arg0: i32, %arg1: i32, %arg2: memref<2xi32, #tpu.memory_space<smem>>, %arg3: memref<2xi32, #tpu.memory_space<smem>>) -> (i32, i32, i32) {
    %c0_i32 = arith.constant 0 : i32
    %c0_i32_0 = arith.constant 0 : i32
    %c0_i32_1 = arith.constant 0 : i32
    return %arg0, %c0_i32, %c0_i32_0 : i32, i32, i32
  }
  func.func @transform_10(%arg0: i32, %arg1: i32, %arg2: memref<2xi32, #tpu.memory_space<smem>>, %arg3: memref<2xi32, #tpu.memory_space<smem>>) -> (i32, i32, i32) {
    %c0_i32 = arith.constant 0 : i32
    %c0_i32_0 = arith.constant 0 : i32
    %c0_i32_1 = arith.constant 0 : i32
    return %arg0, %c0_i32, %c0_i32_0 : i32, i32, i32
  }
  func.func @transform_11(%arg0: i32, %arg1: i32, %arg2: memref<2xi32, #tpu.memory_space<smem>>, %arg3: memref<2xi32, #tpu.memory_space<smem>>) -> (i32, i32, i32) {
    %c0_i32 = arith.constant 0 : i32
    %c0_i32_0 = arith.constant 0 : i32
    %c0_i32_1 = arith.constant 0 : i32
    return %arg0, %c0_i32, %c0_i32_0 : i32, i32, i32
  }
  func.func @transform_12(%arg0: i32, %arg1: i32, %arg2: memref<2xi32, #tpu.memory_space<smem>>, %arg3: memref<2xi32, #tpu.memory_space<smem>>) -> (i32, i32, i32) {
    %c0_i32 = arith.constant 0 : i32
    %c0_i32_0 = arith.constant 0 : i32
    %c0_i32_1 = arith.constant 0 : i32
    return %arg0, %c0_i32, %c0_i32_0 : i32, i32, i32
  }
  func.func @transform_13(%arg0: i32, %arg1: i32, %arg2: memref<2xi32, #tpu.memory_space<smem>>, %arg3: memref<2xi32, #tpu.memory_space<smem>>) -> (i32, i32, i32) {
    %c0_i32 = arith.constant 0 : i32
    %c0_i32_0 = arith.constant 0 : i32
    %c0_i32_1 = arith.constant 0 : i32
    return %arg0, %c0_i32, %c0_i32_0 : i32, i32, i32
  }
  func.func @transform_14(%arg0: i32, %arg1: i32, %arg2: memref<2xi32, #tpu.memory_space<smem>>, %arg3: memref<2xi32, #tpu.memory_space<smem>>) -> (i32, i32, i32) {
    %c0_i32 = arith.constant 0 : i32
    %c0_i32_0 = arith.constant 0 : i32
    %c0_i32_1 = arith.constant 0 : i32
    return %arg0, %c0_i32, %c0_i32_0 : i32, i32, i32
  }
  func.func @transform_15(%arg0: i32, %arg1: i32, %arg2: memref<2xi32, #tpu.memory_space<smem>>, %arg3: memref<2xi32, #tpu.memory_space<smem>>) -> (i32, i32, i32) {
    %c0_i32 = arith.constant 0 : i32
    %c0_i32_0 = arith.constant 0 : i32
    %c0_i32_1 = arith.constant 0 : i32
    return %arg0, %c0_i32, %c0_i32_0 : i32, i32, i32
  }
  func.func @transform_16(%arg0: i32, %arg1: i32, %arg2: memref<2xi32, #tpu.memory_space<smem>>, %arg3: memref<2xi32, #tpu.memory_space<smem>>) -> (i32, i32, i32) {
    %c0_i32 = arith.constant 0 : i32
    %c0_i32_0 = arith.constant 0 : i32
    %c0_i32_1 = arith.constant 0 : i32
    return %arg0, %c0_i32, %c0_i32_0 : i32, i32, i32
  }
}

</mosaic_0001>

<llo_original>
// kernel: tpu_custom_call.1
$region0: #{tpu_custom_call.1}
  #allocation0 [shape = 'u32[]', space=smem, size = 0x4, offset = 0x4, fixed_abs, tag = 'smem constant byte address 0x4 - core index']
  #allocation1 [shape = 'u32[144,128]{1,0:T(1,128)}', space=vmem, size = 0x12000, scoped, tag = 'internal scratch']
  #allocation2 [shape = 's32[1]{0}', space=sflag, size = 0x4, scoped, tag = 'scoped memory for tpu_custom_call.1']
  #allocation3 [shape = 'u8[512]{0}', space=smem, size = 0x200, scoped, tag = 'prefetched SMEM operand 0']
  #allocation4 [shape = 'u8[512]{0}', space=smem, size = 0x200, scoped, tag = 'prefetched SMEM operand 1']
  %s0 = inlined_call_operand.hbm [shape: s32[2], index: 0, kind: input, shape index: {}]
  %s1 = inlined_call_operand.hbm [shape: s32[2], index: 1, kind: input, shape index: {}]
  %s2 = inlined_call_operand.vmem [shape: f32[2,8,16], index: 2, kind: input, shape index: {}]
  %s3 = inlined_call_operand.vmem [shape: f32[2,8,16], index: 3, kind: input, shape index: {}]
  %s4 = inlined_call_operand.vmem [shape: f32[2,8,16], index: 4, kind: input, shape index: {}]
  %s5 = inlined_call_operand.vmem [shape: f32[2,8,16], index: 5, kind: input, shape index: {}]
  %s6 = inlined_call_operand.vmem [shape: f32[2,16,8], index: 6, kind: input, shape index: {}]
  %s7 = inlined_call_operand.vmem [shape: f32[2,16,8], index: 7, kind: input, shape index: {}]
  %s8 = inlined_call_operand.vmem [shape: f32[2,1,8], index: 8, kind: input, shape index: {}]
  %s9 = inlined_call_operand.vmem [shape: f32[2,1,8], index: 9, kind: input, shape index: {}]
  %s10 = inlined_call_operand.vmem [shape: f32[2,1,8], index: 10, kind: input, shape index: {}]
  %s11 = inlined_call_operand.vmem [shape: f32[2,1,8], index: 11, kind: input, shape index: {}]
  %s12 = inlined_call_operand.vmem [shape: f32[2,1,8], index: 12, kind: input, shape index: {}]
  %s13 = inlined_call_operand.vmem [shape: f32[2,1,8], index: 13, kind: input, shape index: {}]
  %s14 = inlined_call_operand.vmem [shape: f32[2,4,8], index: 14, kind: input, shape index: {}]
  %s15 = inlined_call_operand.vmem [shape: f32[2,4,8], index: 15, kind: input, shape index: {}]
  %s16 = inlined_call_operand.vmem [shape: f32[2,1,256], index: 16, kind: input, shape index: {}]
  %s17 = inlined_call_operand.vmem [shape: f32[2,1,256], index: 17, kind: input, shape index: {}]
  %s18 = inlined_call_operand.hbm [shape: f32[2,1,128], index: 18, kind: output, shape index: {}]
  %s19 = sld [smem:[#allocation0]]
  $region105: #{tpu_custom_call.1} parent=0
    _
  %s21 = ssub.s32 1, %s19
  %s22 = scalar_select 0, %s21, %s19
  %24 = dma.hbm_to_smem %s0, 16, [#allocation3], [#allocation2]
  %26 = dma.hbm_to_smem %s1, 16, [#allocation4], [#allocation2]
  %27 = dma.done [#allocation2], 32
  %28 = sfence
  $region1: #{tpu_custom_call.1} parent=0
    #allocation5 [shape = 'u8[1024]{0}', space=vmem, size = 0x400, scoped, tag = 'output window, operand 0']
    #allocation6 [shape = 's32[2]{0}', space=sflag, size = 0x8, scoped, tag = 'scoped memory for tpu_custom_call.1']
    %29 = vsyncpa [#allocation6], 0
    %s30 = scalar_lea.sflag [#allocation6], 1
    %31 = vsyncpa %s30, 0
    loop: start=0, step=1, limit=4
    $region2: #{tpu_custom_call.1} parent=1 // loop_pre_header
      _
    $region3: #{tpu_custom_call.1} parent=1 // loop_header
      %s33 = sphi 0, %s37
      %p34 = scmp.ge.s32.totalorder %s33, 4
      %s40 = sphi 0, %s52
      %s41 = sphi 0, %s48
      %s42 = sphi 0, %s40
      %s43 = sphi 0, %s41
      %s44 = sphi 0, %s42
      %s45 = sphi 0, %s43
      %s57 = sphi 0, %s59
      %s60 = sphi 0, %s57
      %s61 = sphi 0, %s60
      %s77 = sphi 0, %s61
      %s85 = sphi 0, %s87
      %s88 = sphi 0, %s85
      %s89 = sphi 0, %s88
      %s105 = sphi 0, %s89
      %s111 = sphi 0, %s113
      %s114 = sphi 0, %s111
      %s115 = sphi 0, %s114
      %s131 = sphi 0, %s115
      %s137 = sphi 0, %s139
      %s140 = sphi 0, %s137
      %s141 = sphi 0, %s140
      %s157 = sphi 0, %s141
      %s165 = sphi 0, %s167
      %s168 = sphi 0, %s165
      %s169 = sphi 0, %s168
      %s185 = sphi 0, %s169
      %s193 = sphi 0, %s195
      %s196 = sphi 0, %s193
      %s197 = sphi 0, %s196
      %s213 = sphi 0, %s197
      %s219 = sphi 0, %s221
      %s222 = sphi 0, %s219
      %s223 = sphi 0, %s222
      %s239 = sphi 0, %s223
      %s245 = sphi 0, %s247
      %s248 = sphi 0, %s245
      %s249 = sphi 0, %s248
      %s265 = sphi 0, %s249
      %s271 = sphi 0, %s273
      %s274 = sphi 0, %s271
      %s275 = sphi 0, %s274
      %s291 = sphi 0, %s275
      %s297 = sphi 0, %s299
      %s300 = sphi 0, %s297
      %s301 = sphi 0, %s300
      %s317 = sphi 0, %s301
      %s323 = sphi 0, %s325
      %s326 = sphi 0, %s323
      %s327 = sphi 0, %s326
      %s343 = sphi 0, %s327
      %s349 = sphi 0, %s351
      %s352 = sphi 0, %s349
      %s353 = sphi 0, %s352
      %s369 = sphi 0, %s353
      %s375 = sphi 0, %s377
      %s378 = sphi 0, %s375
      %s379 = sphi 0, %s378
      %s395 = sphi 0, %s379
      %s401 = sphi 0, %s403
      %s404 = sphi 0, %s401
      %s405 = sphi 0, %s404
      %s421 = sphi 0, %s405
      %s427 = sphi 0, %s429
      %s430 = sphi 0, %s427
      %s431 = sphi 0, %s430
      %s447 = sphi 0, %s431
      %s453 = sphi 0, %s455
      %s456 = sphi 0, %s453
      %s457 = sphi 0, %s456
      %s473 = sphi 0, %s457
      %s479 = sphi 0, %s481
      %s482 = sphi 0, %s479
      %s483 = sphi 0, %s482
      %s499 = sphi 0, %s483
    $region4: #{tpu_custom_call.1} parent=1 // loop_header_branch
      %36 = sbr.rel (%p34) target = $region8
    $region5: #{tpu_custom_call.1} parent=1 // loop_body
      %s38 = ssub.s32 %s33, 1
      %s39 = ssub.s32 %s33, 2
      %s46 = sadd.s32 1, %s41
      %p47 = scmp.ge.s32.totalorder %s46, 1
      %s48 = scalar_select %p47, 0, %s46
      %s49 = sadd.s32 1, %s40
      %s50 = scalar_select %p47, %s49, %s40
      %p51 = scmp.ge.s32.totalorder %s50, 2
      %s52 = scalar_select %p51, 0, %s50
      %s53 = ssub.s32 %s40, %s52
      %s54 = ssub.s32 %s41, %s48
      %s55 = sor.u32 %s53, %s54
      %p56 = scmp.eq.s32.totalorder %s55, 0
      %s58 = sadd.s32 %s57, 1
      %s59 = scalar_select %p56, %s57, %s58
      %p62 = pneg %p56
      %p63 = scmp.eq.s32.totalorder %s33, 1
      %p64 = por %p62, %p63
      %p65 = scmp.ne.s32.totalorder %s57, %s60
      %p66 = scmp.eq.s32.totalorder %s33, 0
      %p67 = por %p65, %p66
      %p68 = scmp.ne.s32.totalorder %s57, %s60
      %p69 = scmp.eq.s32.totalorder %s38, 1
      %p70 = por %p68, %p69
      %p71 = scmp.ne.s32.totalorder %s60, %s61
      %p72 = scmp.eq.s32.totalorder %s38, 0
      %p73 = por %p71, %p72
      %p74 = scmp.ne.s32.totalorder %s60, %s61
      %p75 = scmp.eq.s32.totalorder %s39, 1
      %p76 = por %p74, %p75
      %p78 = scmp.ne.s32.totalorder %s61, %s77
      %p79 = scmp.eq.s32.totalorder %s39, 0
      %p80 = por %p78, %p79
      %s81 = ssub.s32 %s40, %s52
      %s82 = ssub.s32 %s41, %s48
      %s83 = sor.u32 %s81, %s82
      %p84 = scmp.eq.s32.totalorder %s83, 0
      %s86 = sadd.s32 %s85, 1
      %s87 = scalar_select %p84, %s85, %s86
      %p90 = pneg %p84
      %p91 = scmp.eq.s32.totalorder %s33, 1
      %p92 = por %p90, %p91
      %p93 = scmp.ne.s32.totalorder %s85, %s88
      %p94 = scmp.eq.s32.totalorder %s33, 0
      %p95 = por %p93, %p94
      %p96 = scmp.ne.s32.totalorder %s85, %s88
      %p97 = scmp.eq.s32.totalorder %s38, 1
      %p98 = por %p96, %p97
      %p99 = scmp.ne.s32.totalorder %s88, %s89
      %p100 = scmp.eq.s32.totalorder %s38, 0
      %p101 = por %p99, %p100
      %p102 = scmp.ne.s32.totalorder %s88, %s89
      %p103 = scmp.eq.s32.totalorder %s39, 1
      %p104 = por %p102, %p103
      %p106 = scmp.ne.s32.totalorder %s89, %s105
      %p107 = scmp.eq.s32.totalorder %s39, 0
      %p108 = por %p106, %p107
      %s109 = ssub.s32 %s40, %s52
      %p110 = scmp.eq.s32.totalorder %s109, 0
      %s112 = sadd.s32 %s111, 1
      %s113 = scalar_select %p110, %s111, %s112
      %p116 = pneg %p110
      %p117 = scmp.eq.s32.totalorder %s33, 1
      %p118 = por %p116, %p117
      %p119 = scmp.ne.s32.totalorder %s111, %s114
      %p120 = scmp.eq.s32.totalorder %s33, 0
      %p121 = por %p119, %p120
      %p122 = scmp.ne.s32.totalorder %s111, %s114
      %p123 = scmp.eq.s32.totalorder %s38, 1
      %p124 = por %p122, %p123
      %p125 = scmp.ne.s32.totalorder %s114, %s115
      %p126 = scmp.eq.s32.totalorder %s38, 0
      %p127 = por %p125, %p126
      %p128 = scmp.ne.s32.totalorder %s114, %s115
      %p129 = scmp.eq.s32.totalorder %s39, 1
      %p130 = por %p128, %p129
      %p132 = scmp.ne.s32.totalorder %s115, %s131
      %p133 = scmp.eq.s32.totalorder %s39, 0
      %p134 = por %p132, %p133
      %s135 = ssub.s32 %s40, %s52
      %p136 = scmp.eq.s32.totalorder %s135, 0
      %s138 = sadd.s32 %s137, 1
      %s139 = scalar_select %p136, %s137, %s138
      %p142 = pneg %p136
      %p143 = scmp.eq.s32.totalorder %s33, 1
      %p144 = por %p142, %p143
      %p145 = scmp.ne.s32.totalorder %s137, %s140
      %p146 = scmp.eq.s32.totalorder %s33, 0
      %p147 = por %p145, %p146
      %p148 = scmp.ne.s32.totalorder %s137, %s140
      %p149 = scmp.eq.s32.totalorder %s38, 1
      %p150 = por %p148, %p149
      %p151 = scmp.ne.s32.totalorder %s140, %s141
      %p152 = scmp.eq.s32.totalorder %s38, 0
      %p153 = por %p151, %p152
      %p154 = scmp.ne.s32.totalorder %s140, %s141
      %p155 = scmp.eq.s32.totalorder %s39, 1
      %p156 = por %p154, %p155
      %p158 = scmp.ne.s32.totalorder %s141, %s157
      %p159 = scmp.eq.s32.totalorder %s39, 0
      %p160 = por %p158, %p159
      %s161 = ssub.s32 %s40, %s52
      %s162 = ssub.s32 %s41, %s48
      %s163 = sor.u32 %s161, %s162
      %p164 = scmp.eq.s32.totalorder %s163, 0
      %s166 = sadd.s32 %s165, 1
      %s167 = scalar_select %p164, %s165, %s166
      %p170 = pneg %p164
      %p171 = scmp.eq.s32.totalorder %s33, 1
      %p172 = por %p170, %p171
      %p173 = scmp.ne.s32.totalorder %s165, %s168
      %p174 = scmp.eq.s32.totalorder %s33, 0
      %p175 = por %p173, %p174
      %p176 = scmp.ne.s32.totalorder %s165, %s168
      %p177 = scmp.eq.s32.totalorder %s38, 1
      %p178 = por %p176, %p177
      %p179 = scmp.ne.s32.totalorder %s168, %s169
      %p180 = scmp.eq.s32.totalorder %s38, 0
      %p181 = por %p179, %p180
      %p182 = scmp.ne.s32.totalorder %s168, %s169
      %p183 = scmp.eq.s32.totalorder %s39, 1
      %p184 = por %p182, %p183
      %p186 = scmp.ne.s32.totalorder %s169, %s185
      %p187 = scmp.eq.s32.totalorder %s39, 0
      %p188 = por %p186, %p187
      %s189 = ssub.s32 %s40, %s52
      %s190 = ssub.s32 %s41, %s48
      %s191 = sor.u32 %s189, %s190
      %p192 = scmp.eq.s32.totalorder %s191, 0
      %s194 = sadd.s32 %s193, 1
      %s195 = scalar_select %p192, %s193, %s194
      %p198 = pneg %p192
      %p199 = scmp.eq.s32.totalorder %s33, 1
      %p200 = por %p198, %p199
      %p201 = scmp.ne.s32.totalorder %s193, %s196
      %p202 = scmp.eq.s32.totalorder %s33, 0
      %p203 = por %p201, %p202
      %p204 = scmp.ne.s32.totalorder %s193, %s196
      %p205 = scmp.eq.s32.totalorder %s38, 1
      %p206 = por %p204, %p205
      %p207 = scmp.ne.s32.totalorder %s196, %s197
      %p208 = scmp.eq.s32.totalorder %s38, 0
      %p209 = por %p207, %p208
      %p210 = scmp.ne.s32.totalorder %s196, %s197
      %p211 = scmp.eq.s32.totalorder %s39, 1
      %p212 = por %p210, %p211
      %p214 = scmp.ne.s32.totalorder %s197, %s213
      %p215 = scmp.eq.s32.totalorder %s39, 0
      %p216 = por %p214, %p215
      %s217 = ssub.s32 %s40, %s52
      %p218 = scmp.eq.s32.totalorder %s217, 0
      %s220 = sadd.s32 %s219, 1
      %s221 = scalar_select %p218, %s219, %s220
      %p224 = pneg %p218
      %p225 = scmp.eq.s32.totalorder %s33, 1
      %p226 = por %p224, %p225
      %p227 = scmp.ne.s32.totalorder %s219, %s222
      %p228 = scmp.eq.s32.totalorder %s33, 0
      %p229 = por %p227, %p228
      %p230 = scmp.ne.s32.totalorder %s219, %s222
      %p231 = scmp.eq.s32.totalorder %s38, 1
      %p232 = por %p230, %p231
      %p233 = scmp.ne.s32.totalorder %s222, %s223
      %p234 = scmp.eq.s32.totalorder %s38, 0
      %p235 = por %p233, %p234
      %p236 = scmp.ne.s32.totalorder %s222, %s223
      %p237 = scmp.eq.s32.totalorder %s39, 1
      %p238 = por %p236, %p237
      %p240 = scmp.ne.s32.totalorder %s223, %s239
      %p241 = scmp.eq.s32.totalorder %s39, 0
      %p242 = por %p240, %p241
      %s243 = ssub.s32 %s40, %s52
      %p244 = scmp.eq.s32.totalorder %s243, 0
      %s246 = sadd.s32 %s245, 1
      %s247 = scalar_select %p244, %s245, %s246
      %p250 = pneg %p244
      %p251 = scmp.eq.s32.totalorder %s33, 1
      %p252 = por %p250, %p251
      %p253 = scmp.ne.s32.totalorder %s245, %s248
      %p254 = scmp.eq.s32.totalorder %s33, 0
      %p255 = por %p253, %p254
      %p256 = scmp.ne.s32.totalorder %s245, %s248
      %p257 = scmp.eq.s32.totalorder %s38, 1
      %p258 = por %p256, %p257
      %p259 = scmp.ne.s32.totalorder %s248, %s249
      %p260 = scmp.eq.s32.totalorder %s38, 0
      %p261 = por %p259, %p260
      %p262 = scmp.ne.s32.totalorder %s248, %s249
      %p263 = scmp.eq.s32.totalorder %s39, 1
      %p264 = por %p262, %p263
      %p266 = scmp.ne.s32.totalorder %s249, %s265
      %p267 = scmp.eq.s32.totalorder %s39, 0
      %p268 = por %p266, %p267
      %s269 = ssub.s32 %s40, %s52
      %p270 = scmp.eq.s32.totalorder %s269, 0
      %s272 = sadd.s32 %s271, 1
      %s273 = scalar_select %p270, %s271, %s272
      %p276 = pneg %p270
      %p277 = scmp.eq.s32.totalorder %s33, 1
      %p278 = por %p276, %p277
      %p279 = scmp.ne.s32.totalorder %s271, %s274
      %p280 = scmp.eq.s32.totalorder %s33, 0
      %p281 = por %p279, %p280
      %p282 = scmp.ne.s32.totalorder %s271, %s274
      %p283 = scmp.eq.s32.totalorder %s38, 1
      %p284 = por %p282, %p283
      %p285 = scmp.ne.s32.totalorder %s274, %s275
      %p286 = scmp.eq.s32.totalorder %s38, 0
      %p287 = por %p285, %p286
      %p288 = scmp.ne.s32.totalorder %s274, %s275
      %p289 = scmp.eq.s32.totalorder %s39, 1
      %p290 = por %p288, %p289
      %p292 = scmp.ne.s32.totalorder %s275, %s291
      %p293 = scmp.eq.s32.totalorder %s39, 0
      %p294 = por %p292, %p293
      %s295 = ssub.s32 %s40, %s52
      %p296 = scmp.eq.s32.totalorder %s295, 0
      %s298 = sadd.s32 %s297, 1
      %s299 = scalar_select %p296, %s297, %s298
      %p302 = pneg %p296
      %p303 = scmp.eq.s32.totalorder %s33, 1
      %p304 = por %p302, %p303
      %p305 = scmp.ne.s32.totalorder %s297, %s300
      %p306 = scmp.eq.s32.totalorder %s33, 0
      %p307 = por %p305, %p306
      %p308 = scmp.ne.s32.totalorder %s297, %s300
      %p309 = scmp.eq.s32.totalorder %s38, 1
      %p310 = por %p308, %p309
      %p311 = scmp.ne.s32.totalorder %s300, %s301
      %p312 = scmp.eq.s32.totalorder %s38, 0
      %p313 = por %p311, %p312
      %p314 = scmp.ne.s32.totalorder %s300, %s301
      %p315 = scmp.eq.s32.totalorder %s39, 1
      %p316 = por %p314, %p315
      %p318 = scmp.ne.s32.totalorder %s301, %s317
      %p319 = scmp.eq.s32.totalorder %s39, 0
      %p320 = por %p318, %p319
      %s321 = ssub.s32 %s40, %s52
      %p322 = scmp.eq.s32.totalorder %s321, 0
      %s324 = sadd.s32 %s323, 1
      %s325 = scalar_select %p322, %s323, %s324
      %p328 = pneg %p322
      %p329 = scmp.eq.s32.totalorder %s33, 1
      %p330 = por %p328, %p329
      %p331 = scmp.ne.s32.totalorder %s323, %s326
      %p332 = scmp.eq.s32.totalorder %s33, 0
      %p333 = por %p331, %p332
      %p334 = scmp.ne.s32.totalorder %s323, %s326
      %p335 = scmp.eq.s32.totalorder %s38, 1
      %p336 = por %p334, %p335
      %p337 = scmp.ne.s32.totalorder %s326, %s327
      %p338 = scmp.eq.s32.totalorder %s38, 0
      %p339 = por %p337, %p338
      %p340 = scmp.ne.s32.totalorder %s326, %s327
      %p341 = scmp.eq.s32.totalorder %s39, 1
      %p342 = por %p340, %p341
      %p344 = scmp.ne.s32.totalorder %s327, %s343
      %p345 = scmp.eq.s32.totalorder %s39, 0
      %p346 = por %p344, %p345
      %s347 = ssub.s32 %s40, %s52
      %p348 = scmp.eq.s32.totalorder %s347, 0
      %s350 = sadd.s32 %s349, 1
      %s351 = scalar_select %p348, %s349, %s350
      %p354 = pneg %p348
      %p355 = scmp.eq.s32.totalorder %s33, 1
      %p356 = por %p354, %p355
      %p357 = scmp.ne.s32.totalorder %s349, %s352
      %p358 = scmp.eq.s32.totalorder %s33, 0
      %p359 = por %p357, %p358
      %p360 = scmp.ne.s32.totalorder %s349, %s352
      %p361 = scmp.eq.s32.totalorder %s38, 1
      %p362 = por %p360, %p361
      %p363 = scmp.ne.s32.totalorder %s352, %s353
      %p364 = scmp.eq.s32.totalorder %s38, 0
      %p365 = por %p363, %p364
      %p366 = scmp.ne.s32.totalorder %s352, %s353
      %p367 = scmp.eq.s32.totalorder %s39, 1
      %p368 = por %p366, %p367
      %p370 = scmp.ne.s32.totalorder %s353, %s369
      %p371 = scmp.eq.s32.totalorder %s39, 0
      %p372 = por %p370, %p371
      %s373 = ssub.s32 %s40, %s52
      %p374 = scmp.eq.s32.totalorder %s373, 0
      %s376 = sadd.s32 %s375, 1
      %s377 = scalar_select %p374, %s375, %s376
      %p380 = pneg %p374
      %p381 = scmp.eq.s32.totalorder %s33, 1
      %p382 = por %p380, %p381
      %p383 = scmp.ne.s32.totalorder %s375, %s378
      %p384 = scmp.eq.s32.totalorder %s33, 0
      %p385 = por %p383, %p384
      %p386 = scmp.ne.s32.totalorder %s375, %s378
      %p387 = scmp.eq.s32.totalorder %s38, 1
      %p388 = por %p386, %p387
      %p389 = scmp.ne.s32.totalorder %s378, %s379
      %p390 = scmp.eq.s32.totalorder %s38, 0
      %p391 = por %p389, %p390
      %p392 = scmp.ne.s32.totalorder %s378, %s379
      %p393 = scmp.eq.s32.totalorder %s39, 1
      %p394 = por %p392, %p393
      %p396 = scmp.ne.s32.totalorder %s379, %s395
      %p397 = scmp.eq.s32.totalorder %s39, 0
      %p398 = por %p396, %p397
      %s399 = ssub.s32 %s40, %s52
      %p400 = scmp.eq.s32.totalorder %s399, 0
      %s402 = sadd.s32 %s401, 1
      %s403 = scalar_select %p400, %s401, %s402
      %p406 = pneg %p400
      %p407 = scmp.eq.s32.totalorder %s33, 1
      %p408 = por %p406, %p407
      %p409 = scmp.ne.s32.totalorder %s401, %s404
      %p410 = scmp.eq.s32.totalorder %s33, 0
      %p411 = por %p409, %p410
      %p412 = scmp.ne.s32.totalorder %s401, %s404
      %p413 = scmp.eq.s32.totalorder %s38, 1
      %p414 = por %p412, %p413
      %p415 = scmp.ne.s32.totalorder %s404, %s405
      %p416 = scmp.eq.s32.totalorder %s38, 0
      %p417 = por %p415, %p416
      %p418 = scmp.ne.s32.totalorder %s404, %s405
      %p419 = scmp.eq.s32.totalorder %s39, 1
      %p420 = por %p418, %p419
      %p422 = scmp.ne.s32.totalorder %s405, %s421
      %p423 = scmp.eq.s32.totalorder %s39, 0
      %p424 = por %p422, %p423
      %s425 = ssub.s32 %s40, %s52
      %p426 = scmp.eq.s32.totalorder %s425, 0
      %s428 = sadd.s32 %s427, 1
      %s429 = scalar_select %p426, %s427, %s428
      %p432 = pneg %p426
      %p433 = scmp.eq.s32.totalorder %s33, 1
      %p434 = por %p432, %p433
      %p435 = scmp.ne.s32.totalorder %s427, %s430
      %p436 = scmp.eq.s32.totalorder %s33, 0
      %p437 = por %p435, %p436
      %p438 = scmp.ne.s32.totalorder %s427, %s430
      %p439 = scmp.eq.s32.totalorder %s38, 1
      %p440 = por %p438, %p439
      %p441 = scmp.ne.s32.totalorder %s430, %s431
      %p442 = scmp.eq.s32.totalorder %s38, 0
      %p443 = por %p441, %p442
      %p444 = scmp.ne.s32.totalorder %s430, %s431
      %p445 = scmp.eq.s32.totalorder %s39, 1
      %p446 = por %p444, %p445
      %p448 = scmp.ne.s32.totalorder %s431, %s447
      %p449 = scmp.eq.s32.totalorder %s39, 0
      %p450 = por %p448, %p449
      %s451 = ssub.s32 %s40, %s52
      %p452 = scmp.eq.s32.totalorder %s451, 0
      %s454 = sadd.s32 %s453, 1
      %s455 = scalar_select %p452, %s453, %s454
      %p458 = pneg %p452
      %p459 = scmp.eq.s32.totalorder %s33, 1
      %p460 = por %p458, %p459
      %p461 = scmp.ne.s32.totalorder %s453, %s456
      %p462 = scmp.eq.s32.totalorder %s33, 0
      %p463 = por %p461, %p462
      %p464 = scmp.ne.s32.totalorder %s453, %s456
      %p465 = scmp.eq.s32.totalorder %s38, 1
      %p466 = por %p464, %p465
      %p467 = scmp.ne.s32.totalorder %s456, %s457
      %p468 = scmp.eq.s32.totalorder %s38, 0
      %p469 = por %p467, %p468
      %p470 = scmp.ne.s32.totalorder %s456, %s457
      %p471 = scmp.eq.s32.totalorder %s39, 1
      %p472 = por %p470, %p471
      %p474 = scmp.ne.s32.totalorder %s457, %s473
      %p475 = scmp.eq.s32.totalorder %s39, 0
      %p476 = por %p474, %p475
      %s477 = ssub.s32 %s40, %s52
      %p478 = scmp.eq.s32.totalorder %s477, 0
      %s480 = sadd.s32 %s479, 1
      %s481 = scalar_select %p478, %s479, %s480
      %p484 = pneg %p478
      %p485 = scmp.eq.s32.totalorder %s33, 1
      %p486 = por %p484, %p485
      %p487 = scmp.ne.s32.totalorder %s479, %s482
      %p488 = scmp.eq.s32.totalorder %s33, 0
      %p489 = por %p487, %p488
      %p490 = scmp.ne.s32.totalorder %s479, %s482
      %p491 = scmp.eq.s32.totalorder %s38, 1
      %p492 = por %p490, %p491
      %p493 = scmp.ne.s32.totalorder %s482, %s483
      %p494 = scmp.eq.s32.totalorder %s38, 0
      %p495 = por %p493, %p494
      %p496 = scmp.ne.s32.totalorder %s482, %s483
      %p497 = scmp.eq.s32.totalorder %s39, 1
      %p498 = por %p496, %p497
      %p500 = scmp.ne.s32.totalorder %s483, %s499
      %p501 = scmp.eq.s32.totalorder %s39, 0
      %p502 = por %p500, %p501
      %p503 = scmp.le.s32.totalorder 1, %s33
      %p504 = scmp.lt.s32.totalorder %s33, 3
      %p505 = pnand %p503, %p504
      %p506 = pneg %p505
      // Predicated region
      $region9: #{tpu_custom_call.1} parent=5 // pred_check
        _
      $region10: #{tpu_custom_call.1} parent=5 // pred_check_branch
        %508 = sbr.rel (%p505) target = $region12
      $region11: #{tpu_custom_call.1} parent=5 // pred_region
        %s509 = ssub.s32 %s33, 1
      $region12: #{tpu_custom_call.1} parent=5 // pred_fallthru
        _
      %p510 = scmp.lt.s32.totalorder %s33, 2
      // Predicated region
      $region13: #{tpu_custom_call.1} parent=5 // pred_check
        %p511 = pneg %p510
      $region14: #{tpu_custom_call.1} parent=5 // pred_check_branch
        %513 = sbr.rel (%p511) target = $region16
      $region15: #{tpu_custom_call.1} parent=5 // pred_region
        // Predicated region
        $region17: #{tpu_custom_call.1} parent=15 // pred_check
          %p514 = pneg %p67
        $region18: #{tpu_custom_call.1} parent=15 // pred_check_branch
          %516 = sbr.rel (%p514) target = $region20
        $region19: #{tpu_custom_call.1} parent=15 // pred_region
          %p517 = scmp.lt.s32.totalorder %s40, 1
          %s518 = scalar_select %p517, %s40, 1
          %p519 = scmp.lt.s32.totalorder %s41, 0
          %s520 = scalar_select %p519, %s41, 0
          %s521 = sadd.s32 %s520, %s518
          %s522 = smul.addr %s521, 8
          %s523 = scalar_lea.vmem %s2, %s522
        $region20: #{tpu_custom_call.1} parent=15 // pred_fallthru
          _
        // Predicated region
        $region21: #{tpu_custom_call.1} parent=15 // pred_check
          %p524 = pneg %p95
        $region22: #{tpu_custom_call.1} parent=15 // pred_check_branch
          %526 = sbr.rel (%p524) target = $region24
        $region23: #{tpu_custom_call.1} parent=15 // pred_region
          %p527 = scmp.lt.s32.totalorder %s40, 1
          %s528 = scalar_select %p527, %s40, 1
          %p529 = scmp.lt.s32.totalorder %s41, 0
          %s530 = scalar_select %p529, %s41, 0
          %s531 = sadd.s32 %s530, %s528
          %s532 = smul.addr %s531, 8
          %s533 = scalar_lea.vmem %s3, %s532
        $region24: #{tpu_custom_call.1} parent=15 // pred_fallthru
          _
        // Predicated region
        $region25: #{tpu_custom_call.1} parent=15 // pred_check
          %p534 = pneg %p121
        $region26: #{tpu_custom_call.1} parent=15 // pred_check_branch
          %536 = sbr.rel (%p534) target = $region28
        $region27: #{tpu_custom_call.1} parent=15 // pred_region
          %p537 = scmp.lt.s32.totalorder %s40, 1
          %s538 = scalar_select %p537, %s40, 1
          %s539 = smul.addr %s538, 8
          %s540 = scalar_lea.vmem %s4, %s539
        $region28: #{tpu_custom_call.1} parent=15 // pred_fallthru
          _
        // Predicated region
        $region29: #{tpu_custom_call.1} parent=15 // pred_check
          %p541 = pneg %p147
        $region30: #{tpu_custom_call.1} parent=15 // pred_check_branch
          %543 = sbr.rel (%p541) target = $region32
        $region31: #{tpu_custom_call.1} parent=15 // pred_region
          %p544 = scmp.lt.s32.totalorder %s40, 1
          %s545 = scalar_select %p544, %s40, 1
          %s546 = smul.addr %s545, 8
          %s547 = scalar_lea.vmem %s5, %s546
        $region32: #{tpu_custom_call.1} parent=15 // pred_fallthru
          _
        // Predicated region
        $region33: #{tpu_custom_call.1} parent=15 // pred_check
          %p548 = pneg %p175
        $region34: #{tpu_custom_call.1} parent=15 // pred_check_branch
          %550 = sbr.rel (%p548) target = $region36
        $region35: #{tpu_custom_call.1} parent=15 // pred_region
          %s551 = smul.u32 2, %s41
          %p552 = scmp.lt.s32.totalorder %s40, 1
          %s553 = scalar_select %p552, %s40, 1
          %p554 = scmp.lt.s32.totalorder %s551, 1
          %s555 = scalar_select %p554, %s551, 1
          %s556 = smul.addr %s553, 2
          %s557 = sadd.s32 %s555, %s556
          %s558 = smul.addr %s557, 8
          %s559 = scalar_lea.vmem %s6, %s558
          %s560 = smul.u32 2, %s41
        $region36: #{tpu_custom_call.1} parent=15 // pred_fallthru
          _
        // Predicated region
        $region37: #{tpu_custom_call.1} parent=15 // pred_check
          %p561 = pneg %p203
        $region38: #{tpu_custom_call.1} parent=15 // pred_check_branch
          %563 = sbr.rel (%p561) target = $region40
        $region39: #{tpu_custom_call.1} parent=15 // pred_region
          %s564 = smul.u32 2, %s41
          %p565 = scmp.lt.s32.totalorder %s40, 1
          %s566 = scalar_select %p565, %s40, 1
          %p567 = scmp.lt.s32.totalorder %s564, 1
          %s568 = scalar_select %p567, %s564, 1
          %s569 = smul.addr %s566, 2
          %s570 = sadd.s32 %s568, %s569
          %s571 = smul.addr %s570, 8
          %s572 = scalar_lea.vmem %s7, %s571
          %s573 = smul.u32 2, %s41
        $region40: #{tpu_custom_call.1} parent=15 // pred_fallthru
          _
        // Predicated region
        $region41: #{tpu_custom_call.1} parent=15 // pred_check
          %p574 = pneg %p229
        $region42: #{tpu_custom_call.1} parent=15 // pred_check_branch
          %576 = sbr.rel (%p574) target = $region44
        $region43: #{tpu_custom_call.1} parent=15 // pred_region
          %p577 = scmp.lt.s32.totalorder %s40, 1
          %s578 = scalar_select %p577, %s40, 1
          %s579 = scalar_lea.vmem %s8, %s578
        $region44: #{tpu_custom_call.1} parent=15 // pred_fallthru
          _
        // Predicated region
        $region45: #{tpu_custom_call.1} parent=15 // pred_check
          %p580 = pneg %p255
        $region46: #{tpu_custom_call.1} parent=15 // pred_check_branch
          %582 = sbr.rel (%p580) target = $region48
        $region47: #{tpu_custom_call.1} parent=15 // pred_region
          %p583 = scmp.lt.s32.totalorder %s40, 1
          %s584 = scalar_select %p583, %s40, 1
          %s585 = scalar_lea.vmem %s9, %s584
        $region48: #{tpu_custom_call.1} parent=15 // pred_fallthru
          _
        // Predicated region
        $region49: #{tpu_custom_call.1} parent=15 // pred_check
          %p586 = pneg %p281
        $region50: #{tpu_custom_call.1} parent=15 // pred_check_branch
          %588 = sbr.rel (%p586) target = $region52
        $region51: #{tpu_custom_call.1} parent=15 // pred_region
          %p589 = scmp.lt.s32.totalorder %s40, 1
          %s590 = scalar_select %p589, %s40, 1
          %s591 = scalar_lea.vmem %s10, %s590
        $region52: #{tpu_custom_call.1} parent=15 // pred_fallthru
          _
        // Predicated region
        $region53: #{tpu_custom_call.1} parent=15 // pred_check
          %p592 = pneg %p307
        $region54: #{tpu_custom_call.1} parent=15 // pred_check_branch
          %594 = sbr.rel (%p592) target = $region56
        $region55: #{tpu_custom_call.1} parent=15 // pred_region
          %p595 = scmp.lt.s32.totalorder %s40, 1
          %s596 = scalar_select %p595, %s40, 1
          %s597 = scalar_lea.vmem %s11, %s596
        $region56: #{tpu_custom_call.1} parent=15 // pred_fallthru
          _
        // Predicated region
        $region57: #{tpu_custom_call.1} parent=15 // pred_check
          %p598 = pneg %p333
        $region58: #{tpu_custom_call.1} parent=15 // pred_check_branch
          %600 = sbr.rel (%p598) target = $region60
        $region59: #{tpu_custom_call.1} parent=15 // pred_region
          %p601 = scmp.lt.s32.totalorder %s40, 1
          %s602 = scalar_select %p601, %s40, 1
          %s603 = scalar_lea.vmem %s12, %s602
        $region60: #{tpu_custom_call.1} parent=15 // pred_fallthru
          _
        // Predicated region
        $region61: #{tpu_custom_call.1} parent=15 // pred_check
          %p604 = pneg %p359
        $region62: #{tpu_custom_call.1} parent=15 // pred_check_branch
          %606 = sbr.rel (%p604) target = $region64
        $region63: #{tpu_custom_call.1} parent=15 // pred_region
          %p607 = scmp.lt.s32.totalorder %s40, 1
          %s608 = scalar_select %p607, %s40, 1
          %s609 = scalar_lea.vmem %s13, %s608
        $region64: #{tpu_custom_call.1} parent=15 // pred_fallthru
          _
        // Predicated region
        $region65: #{tpu_custom_call.1} parent=15 // pred_check
          %p610 = pneg %p385
        $region66: #{tpu_custom_call.1} parent=15 // pred_check_branch
          %612 = sbr.rel (%p610) target = $region68
        $region67: #{tpu_custom_call.1} parent=15 // pred_region
          %p613 = scmp.lt.s32.totalorder %s40, 1
          %s614 = scalar_select %p613, %s40, 1
          %s615 = smul.addr %s614, 4
          %s616 = scalar_lea.vmem %s14, %s615
        $region68: #{tpu_custom_call.1} parent=15 // pred_fallthru
          _
        // Predicated region
        $region69: #{tpu_custom_call.1} parent=15 // pred_check
          %p617 = pneg %p411
        $region70: #{tpu_custom_call.1} parent=15 // pred_check_branch
          %619 = sbr.rel (%p617) target = $region72
        $region71: #{tpu_custom_call.1} parent=15 // pred_region
          %p620 = scmp.lt.s32.totalorder %s40, 1
          %s621 = scalar_select %p620, %s40, 1
          %s622 = smul.addr %s621, 4
          %s623 = scalar_lea.vmem %s15, %s622
        $region72: #{tpu_custom_call.1} parent=15 // pred_fallthru
          _
        // Predicated region
        $region73: #{tpu_custom_call.1} parent=15 // pred_check
          %p624 = pneg %p437
        $region74: #{tpu_custom_call.1} parent=15 // pred_check_branch
          %626 = sbr.rel (%p624) target = $region76
        $region75: #{tpu_custom_call.1} parent=15 // pred_region
          %p627 = scmp.lt.s32.totalorder %s40, 1
          %s628 = scalar_select %p627, %s40, 1
          %s629 = smul.addr %s628, 2
          %s630 = scalar_lea.vmem %s16, %s629
        $region76: #{tpu_custom_call.1} parent=15 // pred_fallthru
          _
        // Predicated region
        $region77: #{tpu_custom_call.1} parent=15 // pred_check
          %p631 = pneg %p463
        $region78: #{tpu_custom_call.1} parent=15 // pred_check_branch
          %633 = sbr.rel (%p631) target = $region80
        $region79: #{tpu_custom_call.1} parent=15 // pred_region
          %p634 = scmp.lt.s32.totalorder %s40, 1
          %s635 = scalar_select %p634, %s40, 1
          %s636 = smul.addr %s635, 2
          %s637 = scalar_lea.vmem %s17, %s636
        $region80: #{tpu_custom_call.1} parent=15 // pred_fallthru
          _
      $region16: #{tpu_custom_call.1} parent=5 // pred_fallthru
        _
      %p638 = scmp.le.s32.totalorder 1, %s33
      %p639 = scmp.lt.s32.totalorder %s33, 3
      %p640 = pnand %p638, %p639
      %p641 = pneg %p640
      // Predicated region
      $region81: #{tpu_custom_call.1} parent=5 // pred_check
        _
      $region82: #{tpu_custom_call.1} parent=5 // pred_check_branch
        %643 = sbr.rel (%p640) target = $region84
      $region83: #{tpu_custom_call.1} parent=5 // pred_region
        %s644 = ssub.s32 %s33, 1
        %p645 = scmp.lt.s32.totalorder %s42, 1
        %s646 = scalar_select %p645, %s42, 1
        %p647 = scmp.lt.s32.totalorder %s43, 0
        %s648 = scalar_select %p647, %s43, 0
        %s649 = sadd.s32 %s648, %s646
        %s650 = smul.addr %s649, 8
        %s651 = scalar_lea.vmem %s2, %s650
        %p652 = pneg %p73
        %p653 = pneg %p70
        %p654 = scmp.lt.s32.totalorder %s42, 1
        %s655 = scalar_select %p654, %s42, 1
        %p656 = scmp.lt.s32.totalorder %s43, 0
        %s657 = scalar_select %p656, %s43, 0
        %s658 = sadd.s32 %s657, %s655
        %s659 = smul.addr %s658, 8
        %s660 = scalar_lea.vmem %s3, %s659
        %p661 = pneg %p101
        %p662 = pneg %p98
        %p663 = scmp.lt.s32.totalorder %s42, 1
        %s664 = scalar_select %p663, %s42, 1
        %s665 = smul.addr %s664, 8
        %s666 = scalar_lea.vmem %s4, %s665
        %p667 = pneg %p127
        %p668 = pneg %p124
        %p669 = scmp.lt.s32.totalorder %s42, 1
        %s670 = scalar_select %p669, %s42, 1
        %s671 = smul.addr %s670, 8
        %s672 = scalar_lea.vmem %s5, %s671
        %p673 = pneg %p153
        %p674 = pneg %p150
        %s675 = smul.u32 2, %s43
        %p676 = scmp.lt.s32.totalorder %s42, 1
        %s677 = scalar_select %p676, %s42, 1
        %p678 = scmp.lt.s32.totalorder %s675, 1
        %s679 = scalar_select %p678, %s675, 1
        %s680 = smul.addr %s677, 2
        %s681 = sadd.s32 %s679, %s680
        %s682 = smul.addr %s681, 8
        %s683 = scalar_lea.vmem %s6, %s682
        %p684 = pneg %p181
        %p685 = pneg %p178
        %s686 = smul.u32 2, %s43
        %p687 = scmp.lt.s32.totalorder %s42, 1
        %s688 = scalar_select %p687, %s42, 1
        %p689 = scmp.lt.s32.totalorder %s686, 1
        %s690 = scalar_select %p689, %s686, 1
        %s691 = smul.addr %s688, 2
        %s692 = sadd.s32 %s690, %s691
        %s693 = smul.addr %s692, 8
        %s694 = scalar_lea.vmem %s7, %s693
        %p695 = pneg %p209
        %p696 = pneg %p206
        %p697 = scmp.lt.s32.totalorder %s42, 1
        %s698 = scalar_select %p697, %s42, 1
        %s699 = scalar_lea.vmem %s8, %s698
        %p700 = pneg %p235
        %p701 = pneg %p232
        %p702 = scmp.lt.s32.totalorder %s42, 1
        %s703 = scalar_select %p702, %s42, 1
        %s704 = scalar_lea.vmem %s9, %s703
        %p705 = pneg %p261
        %p706 = pneg %p258
        %p707 = scmp.lt.s32.totalorder %s42, 1
        %s708 = scalar_select %p707, %s42, 1
        %s709 = scalar_lea.vmem %s10, %s708
        %p710 = pneg %p287
        %p711 = pneg %p284
        %p712 = scmp.lt.s32.totalorder %s42, 1
        %s713 = scalar_select %p712, %s42, 1
        %s714 = scalar_lea.vmem %s11, %s713
        %p715 = pneg %p313
        %p716 = pneg %p310
        %p717 = scmp.lt.s32.totalorder %s42, 1
        %s718 = scalar_select %p717, %s42, 1
        %s719 = scalar_lea.vmem %s12, %s718
        %p720 = pneg %p339
        %p721 = pneg %p336
        %p722 = scmp.lt.s32.totalorder %s42, 1
        %s723 = scalar_select %p722, %s42, 1
        %s724 = scalar_lea.vmem %s13, %s723
        %p725 = pneg %p365
        %p726 = pneg %p362
        %p727 = scmp.lt.s32.totalorder %s42, 1
        %s728 = scalar_select %p727, %s42, 1
        %s729 = smul.addr %s728, 4
        %s730 = scalar_lea.vmem %s14, %s729
        %p731 = pneg %p391
        %p732 = pneg %p388
        %p733 = scmp.lt.s32.totalorder %s42, 1
        %s734 = scalar_select %p733, %s42, 1
        %s735 = smul.addr %s734, 4
        %s736 = scalar_lea.vmem %s15, %s735
        %p737 = pneg %p417
        %p738 = pneg %p414
        %p739 = scmp.lt.s32.totalorder %s42, 1
        %s740 = scalar_select %p739, %s42, 1
        %s741 = smul.addr %s740, 2
        %s742 = scalar_lea.vmem %s16, %s741
        %p743 = pneg %p443
        %p744 = pneg %p440
        %p745 = scmp.lt.s32.totalorder %s42, 1
        %s746 = scalar_select %p745, %s42, 1
        %s747 = smul.addr %s746, 2
        %s748 = scalar_lea.vmem %s17, %s747
        %p749 = pneg %p469
        %p750 = pneg %p466
        %p751 = pneg %p495
        %p752 = pneg %p492
        %s753 = sand.u32 %s482, 1
        %s754 = scalar_lea.sflag [#allocation6], %s753
        %s755 = sand.u32 %s482, 1
        %s756 = scalar_lea.vmem [#allocation5], %s755
        %p757 = scmp.lt.s32.totalorder %s42, 1
        %s758 = scalar_select %p757, %s42, 1
        %p759 = scmp.lt.s32.totalorder %s43, 0
        %s760 = scalar_select %p759, %s43, 0
        %s761 = sadd.s32 %s760, %s758
        %s762 = smul.addr %s761, 8
        %s763 = scalar_lea.vmem %s2, %s762
        %p764 = scmp.lt.s32.totalorder %s42, 1
        %s765 = scalar_select %p764, %s42, 1
        %p766 = scmp.lt.s32.totalorder %s43, 0
        %s767 = scalar_select %p766, %s43, 0
        %s768 = sadd.s32 %s767, %s765
        %s769 = smul.addr %s768, 8
        %s770 = scalar_lea.vmem %s3, %s769
        %p771 = scmp.lt.s32.totalorder %s42, 1
        %s772 = scalar_select %p771, %s42, 1
        %s773 = smul.addr %s772, 8
        %s774 = scalar_lea.vmem %s4, %s773
        %p775 = scmp.lt.s32.totalorder %s42, 1
        %s776 = scalar_select %p775, %s42, 1
        %s777 = smul.addr %s776, 8
        %s778 = scalar_lea.vmem %s5, %s777
        %s779 = smul.u32 2, %s43
        %p780 = scmp.lt.s32.totalorder %s42, 1
        %s781 = scalar_select %p780, %s42, 1
        %p782 = scmp.lt.s32.totalorder %s779, 1
        %s783 = scalar_select %p782, %s779, 1
        %s784 = smul.addr %s781, 2
        %s785 = sadd.s32 %s783, %s784
        %s786 = smul.addr %s785, 8
        %s787 = scalar_lea.vmem %s6, %s786
        %s788 = smul.u32 2, %s43
        %s789 = smul.u32 2, %s43
        %p790 = scmp.lt.s32.totalorder %s42, 1
        %s791 = scalar_select %p790, %s42, 1
        %p792 = scmp.lt.s32.totalorder %s789, 1
        %s793 = scalar_select %p792, %s789, 1
        %s794 = smul.addr %s791, 2
        %s795 = sadd.s32 %s793, %s794
        %s796 = smul.addr %s795, 8
        %s797 = scalar_lea.vmem %s7, %s796
        %s798 = smul.u32 2, %s43
        %p799 = scmp.lt.s32.totalorder %s42, 1
        %s800 = scalar_select %p799, %s42, 1
        %s801 = scalar_lea.vmem %s8, %s800
        %p802 = scmp.lt.s32.totalorder %s42, 1
        %s803 = scalar_select %p802, %s42, 1
        %s804 = scalar_lea.vmem %s9, %s803
        %p805 = scmp.lt.s32.totalorder %s42, 1
        %s806 = scalar_select %p805, %s42, 1
        %s807 = scalar_lea.vmem %s10, %s806
        %p808 = scmp.lt.s32.totalorder %s42, 1
        %s809 = scalar_select %p808, %s42, 1
        %s810 = scalar_lea.vmem %s11, %s809
        %p811 = scmp.lt.s32.totalorder %s42, 1
        %s812 = scalar_select %p811, %s42, 1
        %s813 = scalar_lea.vmem %s12, %s812
        %p814 = scmp.lt.s32.totalorder %s42, 1
        %s815 = scalar_select %p814, %s42, 1
        %s816 = scalar_lea.vmem %s13, %s815
        %p817 = scmp.lt.s32.totalorder %s42, 1
        %s818 = scalar_select %p817, %s42, 1
        %s819 = smul.addr %s818, 4
        %s820 = scalar_lea.vmem %s14, %s819
        %p821 = scmp.lt.s32.totalorder %s42, 1
        %s822 = scalar_select %p821, %s42, 1
        %s823 = smul.addr %s822, 4
        %s824 = scalar_lea.vmem %s15, %s823
        %p825 = scmp.lt.s32.totalorder %s42, 1
        %s826 = scalar_select %p825, %s42, 1
        %s827 = smul.addr %s826, 2
        %s828 = scalar_lea.vmem %s16, %s827
        %p829 = scmp.lt.s32.totalorder %s42, 1
        %s830 = scalar_select %p829, %s42, 1
        %s831 = smul.addr %s830, 2
        %s832 = scalar_lea.vmem %s17, %s831
        %v833 = vlaneseq
        %v834 = vand.u32 %v833, 127
        %p835 = scmp.eq.s32.totalorder %s43, 0
        // Predicated region
        $region85: #{tpu_custom_call.1} parent=83 // pred_check
          %p836 = pneg %p835
        $region86: #{tpu_custom_call.1} parent=83 // pred_check_branch
          %838 = sbr.rel (%p836) target = $region88
        $region87: #{tpu_custom_call.1} parent=83 // pred_region
          %839 = vst [vmem:[%s756] sm:$0x1] 0.0
        $region88: #{tpu_custom_call.1} parent=83 // pred_fallthru
          _
        %s840 = sld [smem:[#allocation3 + %s42]]
        %s841 = smul.u32 %s43, 16
        %v842 = vstv %s841
        %v843 = vadd.s32 %v834, %v842
        %v844 = vstv %s840
        %vm845 = vcmp.lt.s32.totalorder %v843, %v844
        %v846 = vsel %vm845, 1, 0
        %v847 = vcvt.s32.f32 %v846
        %v848 = vld [vmem:[%s763] sm:$0xff]
        %v849 = vld [vmem:[%s770] sm:$0xff]
        %v850 = vsub.f32 %v848, %v849
        %v851 = vand.u32 2147483647, %v850
        %v852 = vmul.f32 %v851, %v847
        %vm853 = vcmask 130048
        %v854 = vsel %vm853, %v852, 0.0
        %855 = vadd.xlane.f32.xlu0 %v854
        %v856 = vpop.xlane.xlu0 %855
        %v857 = vrot.slane %v856, 4
        %v858 = vadd.f32 %v856, %v857
        %v859 = vrot.slane %v858, 2
        %v860 = vadd.f32 %v858, %v859
        %v861 = vrot.slane %v860, 1
        %v862 = vadd.f32 %v860, %v861
        %s863 = vtos %v862
        %v864 = vld [vmem:[%s787] sm:$0xff]
        %v865 = vld [vmem:[%s787 + $0x8] sm:$0xff]
        %v866 = vld [vmem:[%s797] sm:$0xff]
        %v867 = vld [vmem:[%s797 + $0x8] sm:$0xff]
        %v868 = vmax.f32 %v866, 1e-12
        %v869 = vmax.f32 %v867, 1e-12
        %v870 = vlog2.pop %v868
        %v871 = vmul.f32 %v870, 0.6931472
        %v872 = vlog2.pop %v869
        %v873 = vmul.f32 %v872, 0.6931472
        %v874 = vmul.f32 %v864, %v871
        %v875 = vmul.f32 %v865, %v873
        %vm876 = vcmask 64512
        %v877 = vsel %vm876, %v874, 0.0
        %v878 = vsel %vm876, %v875, 0.0
        %v879 = vadd.f32 %v877, %v878
        %880 = vadd.xlane.f32.xlu0 %v879
        %v881 = vpop.xlane.xlu0 %880
        %v882 = vrot.slane %v881, 4
        %v883 = vadd.f32 %v881, %v882
        %v884 = vrot.slane %v883, 2
        %v885 = vadd.f32 %v883, %v884
        %v886 = vrot.slane %v885, 1
        %v887 = vadd.f32 %v885, %v886
        %s888 = vtos %v887
        %v889 = vsel %vm876, %v864, 0.0
        %v890 = vsel %vm876, %v865, 0.0
        %v891 = vadd.f32 %v889, %v890
        %892 = vadd.xlane.f32.xlu0 %v891
        %v893 = vpop.xlane.xlu0 %892
        %v894 = vrot.slane %v893, 4
        %v895 = vadd.f32 %v893, %v894
        %v896 = vrot.slane %v895, 2
        %v897 = vadd.f32 %v895, %v896
        %v898 = vrot.slane %v897, 1
        %v899 = vadd.f32 %v897, %v898
        %s900 = vtos %v899
        %v901 = vld [vmem:[%s756] sm:$0x1]
        %vm902 = vcmp.eq.s32.totalorder %v834, 0
        %v903 = vstv %s863
        %v904 = vsel %vm902, %v903, 0.0
        %vm905 = vcmp.eq.s32.totalorder %v834, 6
        %v906 = vstv %s888
        %v907 = vsel %vm905, %v906, 0.0
        %v908 = vadd.f32 %v904, %v907
        %vm909 = vcmp.eq.s32.totalorder %v834, 7
        %v910 = vstv %s900
        %v911 = vsel %vm909, %v910, 0.0
        %v912 = vadd.f32 %v908, %v911
        %v913 = vadd.f32 %v901, %v912
        %914 = vst [vmem:[%s756] sm:$0x1] %v913
        // Predicated region
        $region89: #{tpu_custom_call.1} parent=83 // pred_check
          %p915 = pneg %p835
        $region90: #{tpu_custom_call.1} parent=83 // pred_check_branch
          %917 = sbr.rel (%p915) target = $region92
        $region91: #{tpu_custom_call.1} parent=83 // pred_region
          %s918 = sld [smem:[#allocation4 + %s42]]
          %v919 = vstv %s918
          %vm920 = vcmp.lt.s32.totalorder %v834, %v919
          %v921 = vsel %vm920, 1, 0
          %v922 = vcvt.s32.f32 %v921
          %v923 = vld [vmem:[%s774] sm:$0xff]
          %v924 = vld [vmem:[%s778] sm:$0xff]
          %v925 = vsub.f32 %v923, %v924
          %v926 = vand.u32 2147483647, %v925
          %v927 = vsel %vm853, %v926, 0.0
          %928 = vadd.xlane.f32.xlu0 %v927
          %v929 = vpop.xlane.xlu0 %928
          %v930 = vrot.slane %v929, 4
          %v931 = vadd.f32 %v929, %v930
          %v932 = vrot.slane %v931, 2
          %v933 = vadd.f32 %v931, %v932
          %v934 = vrot.slane %v933, 1
          %v935 = vadd.f32 %v933, %v934
          %s936 = vtos %v935
          %v937 = vld [vmem:[%s820] sm:$0xf]
          %v938 = vld [vmem:[%s824] sm:$0xf]
          %v939 = vsub.f32 %v937, %v938
          %v940 = vand.u32 2147483647, %v939
          %v941 = vmul.f32 %v940, %v922
          %vm942 = vcmask 60416
          %v943 = vsel %vm942, %v941, 0.0
          %944 = vadd.xlane.f32.xlu0 %v943
          %v945 = vpop.xlane.xlu0 %944
          %v946 = vrot.slane %v945, 4
          %v947 = vadd.f32 %v945, %v946
          %v948 = vrot.slane %v947, 2
          %v949 = vadd.f32 %v947, %v948
          %v950 = vrot.slane %v949, 1
          %v951 = vadd.f32 %v949, %v950
          %s952 = vtos %v951
          %v953 = vld [vmem:[%s828] sm:$0x3]
          %v954 = vld [vmem:[%s832] sm:$0x3]
          %v955 = vsub.f32 %v953, %v954
          %v956 = vand.u32 2147483647, %v955
          %v958 = vlaneseq
          %v959 = vshrl.u32 %v958, 7
          %v960 = vsub.s32 0, %v959
          %v961 = vrot.slane %v956, %v960
          %v962 = vlaneseq
          %v963 = vshrl.u32 %v962, 7
          %v964 = vsub.s32 1, %v963
          %v965 = vrot.slane %v956, %v964
          %vm968 = vcmask 1040384
          %v969 = vsel %vm968, %v961, 0.0
          %v970 = vsel %vm968, %v965, 0.0
          %v971 = vadd.f32 %v969, %v970
          %972 = vadd.xlane.f32.xlu0 %v971
          %v973 = vpop.xlane.xlu0 %972
          %v974 = vrot.slane %v973, 4
          %v975 = vadd.f32 %v973, %v974
          %v976 = vrot.slane %v975, 2
          %v977 = vadd.f32 %v975, %v976
          %v978 = vrot.slane %v977, 1
          %v979 = vadd.f32 %v977, %v978
          %s980 = vtos %v979
          %v981 = vld [vmem:[%s801] sm:$0x1]
          %v982 = vld [vmem:[%s804] sm:$0x1]
          %v983 = vsub.f32 %v981, %v982
          %v984 = vmul.f32 %v983, %v983
          %vm985 = vcmask 57344
          %v986 = vsel %vm985, %v984, 0.0
          %987 = vadd.xlane.f32.xlu0 %v986
          %v988 = vpop.xlane.xlu0 %987
          %v989 = vrot.slane %v988, 4
          %v990 = vadd.f32 %v988, %v989
          %v991 = vrot.slane %v990, 2
          %v992 = vadd.f32 %v990, %v991
          %v993 = vrot.slane %v992, 1
          %v994 = vadd.f32 %v992, %v993
          %s995 = vtos %v994
          %v996 = vld [vmem:[%s807] sm:$0x1]
          %v997 = vld [vmem:[%s810] sm:$0x1]
          %v998 = vsub.f32 %v996, %v997
          %v999 = vmul.f32 %v998, %v922
          %v1000 = vmul.f32 %v999, %v999
          %v1001 = vsel %vm985, %v1000, 0.0
          %1002 = vadd.xlane.f32.xlu0 %v1001
          %v1003 = vpop.xlane.xlu0 %1002
          %v1004 = vrot.slane %v1003, 4
          %v1005 = vadd.f32 %v1003, %v1004
          %v1006 = vrot.slane %v1005, 2
          %v1007 = vadd.f32 %v1005, %v1006
          %v1008 = vrot.slane %v1007, 1
          %v1009 = vadd.f32 %v1007, %v1008
          %s1010 = vtos %v1009
          %v1011 = vld [vmem:[%s813] sm:$0x1]
          %v1012 = vld [vmem:[%s816] sm:$0x1]
          %v1013 = vsub.f32 %v1011, %v1012
          %v1014 = vmul.f32 %v1013, %v922
          %v1015 = vmul.f32 %v1014, %v1014
          %v1016 = vsel %vm985, %v1015, 0.0
          %1017 = vadd.xlane.f32.xlu0 %v1016
          %v1018 = vpop.xlane.xlu0 %1017
          %v1019 = vrot.slane %v1018, 4
          %v1020 = vadd.f32 %v1018, %v1019
          %v1021 = vrot.slane %v1020, 2
          %v1022 = vadd.f32 %v1020, %v1021
          %v1023 = vrot.slane %v1022, 1
          %v1024 = vadd.f32 %v1022, %v1023
          %s1025 = vtos %v1024
          %v1026 = vld [vmem:[%s756] sm:$0x1]
          %vm1027 = vcmp.eq.s32.totalorder %v834, 8
          %v1028 = vstv %s936
          %v1029 = vsel %vm1027, %v1028, 0.0
          %vm1030 = vcmp.eq.s32.totalorder %v834, 1
          %v1031 = vstv %s952
          %v1032 = vsel %vm1030, %v1031, 0.0
          %v1033 = vadd.f32 %v1029, %v1032
          %vm1034 = vcmp.eq.s32.totalorder %v834, 2
          %v1035 = vstv %s980
          %v1036 = vsel %vm1034, %v1035, 0.0
          %v1037 = vadd.f32 %v1033, %v1036
          %vm1038 = vcmp.eq.s32.totalorder %v834, 3
          %v1039 = vstv %s995
          %v1040 = vsel %vm1038, %v1039, 0.0
          %v1041 = vadd.f32 %v1037, %v1040
          %vm1042 = vcmp.eq.s32.totalorder %v834, 4
          %v1043 = vstv %s1010
          %v1044 = vsel %vm1042, %v1043, 0.0
          %v1045 = vadd.f32 %v1041, %v1044
          %vm1046 = vcmp.eq.s32.totalorder %v834, 5
          %v1047 = vstv %s1025
          %v1048 = vsel %vm1046, %v1047, 0.0
          %v1049 = vadd.f32 %v1045, %v1048
          %v1050 = vadd.f32 %v1026, %v1049
          %1051 = vst [vmem:[%s756] sm:$0x1] %v1050
        $region92: #{tpu_custom_call.1} parent=83 // pred_fallthru
          _
        %s1052 = sand.u32 %s482, 1
        %s1053 = scalar_lea.sflag [#allocation6], %s1052
        %s1054 = sand.u32 %s482, 1
        %s1055 = scalar_lea.vmem [#allocation5], %s1054
        // Predicated region
        $region93: #{tpu_custom_call.1} parent=83 // pred_check
          %p1056 = pneg %p492
        $region94: #{tpu_custom_call.1} parent=83 // pred_check_branch
          %1058 = sbr.rel (%p1056) target = $region96
        $region95: #{tpu_custom_call.1} parent=83 // pred_region
          %s1060 = ssub.s32 16, 16
          %1061 = vsyncadd %s1053, %s1060
          %s1062 = smul.addr %s42, 16
          %s1063 = scalar_lea.hbm %s18, %s1062
          %s1065 = sshll.u32 %s1055, 4
          %s1066 = int_to_ptr.vmem [resolvable:$true] %s1065
          %1068 = dma.vmem_to_hbm [thread:$0]  %s1066, 16, %s1063, %s1053
        $region96: #{tpu_custom_call.1} parent=83 // pred_fallthru
          _
      $region84: #{tpu_custom_call.1} parent=5 // pred_fallthru
        _
      %p1069 = scmp.le.s32.totalorder 2, %s33
      // Predicated region
      $region97: #{tpu_custom_call.1} parent=5 // pred_check
        %p1070 = pneg %p1069
      $region98: #{tpu_custom_call.1} parent=5 // pred_check_branch
        %1072 = sbr.rel (%p1070) target = $region100
      $region99: #{tpu_custom_call.1} parent=5 // pred_region
        %s1073 = ssub.s32 %s33, 2
        // Predicated region
        $region101: #{tpu_custom_call.1} parent=99 // pred_check
          %p1074 = pneg %p498
        $region102: #{tpu_custom_call.1} parent=99 // pred_check_branch
          %1076 = sbr.rel (%p1074) target = $region104
        $region103: #{tpu_custom_call.1} parent=99 // pred_region
          %s1077 = sand.u32 %s483, 1
          %s1078 = scalar_lea.sflag [#allocation6], %s1077
          %s1079 = sand.u32 %s483, 1
          %s1080 = scalar_lea.vmem [#allocation5], %s1079
          %1081 = dma.done %s1078, 16
        $region104: #{tpu_custom_call.1} parent=99 // pred_fallthru
          _
      $region100: #{tpu_custom_call.1} parent=5 // pred_fallthru
        _
    $region6: #{tpu_custom_call.1} parent=1 // loop_footer
      %s37 = sadd.s32 1, %s33
    $region7: #{tpu_custom_call.1} parent=1 // loop_footer_branch
      %32 = sbr.rel target = $region3
    $region8: #{tpu_custom_call.1} parent=1 // loop_exit
      _
    %1082 = vsyncpa [#allocation6], 1
    %s1083 = scalar_lea.sflag [#allocation6], 1
    %1084 = vsyncpa %s1083, 1

</llo_original>
